<compile_context>
chip_gen: v5e
topology: v5e:2x2
jax: 0.10.0
libtpu: 0.0.40
codegen_flags: <defaults>
</compile_context>

<pallas_src>
import jax
import jax.numpy as jnp
from jax import lax
from jax.experimental import pallas as pl
from jax.experimental.pallas import tpu as pltpu

LANES = 128      # vreg lane width
SUBLANES = 8     # f32 sublane count
CHUNK = 16       # rows per inner-loop iteration (2 f32 vregs per temp, fits regfile)
H = 5            # hidden width of the PINN MLP
N_PARAMS = 2 * H + H + 4 * (H * H + H) + H + 1   # = 141


def _round_up(a, b):
    return ((a + b - 1) // b) * b


# -----------------------------------------------------------------------------
# Kernel
# -----------------------------------------------------------------------------
def pinn_mlp_kernel(p_ref, x_ref, t_ref, out_ref):
    """p_ref: (141,) f32 in SMEM (sigmoid affine pre-folded);
    x/t/out: (tb, 128) f32 batch slabs in VMEM.

    Packed layout (row-major (fan_in, fan_out)):
      [ w1(2*5) | b1(5) | w2(5*5) | b2(5) | w3 | b3 | w4 | b4 | w5 | b5 | wo(5) | bo(1) ]
    """
    # Hoist all weight scalars out of the chunk loop: SMEM sld once per grid step.
    p = [p_ref[k] for k in range(N_PARAMS)]

    n_chunks = x_ref.shape[0] // CHUNK

    def chunk_body(c, carry):
        r0 = pl.multiple_of(c * CHUNK, CHUNK)
        x = x_ref[pl.ds(r0, CHUNK), :]
        t = t_ref[pl.ds(r0, CHUNK), :]

        # ---- layer 1: 2 -> 5 (affine fold applied; bare tanh on EUP) --------
        h = [jnp.tanh(x * p[0 * H + j] + t * p[1 * H + j] + p[2 * H + j])
             for j in range(H)]

        # ---- hidden layers 2..5: 5 -> 5, unrolled scalar-broadcast FMAs -----
        off = 3 * H  # = 15, start of w2
        for _layer in range(4):
            w_off = off
            b_off = off + H * H
            h_new = []
            for j in range(H):
                z = h[0] * p[w_off + 0 * H + j]
                for i in range(1, H):
                    z = z + h[i] * p[w_off + i * H + j]
                h_new.append(jnp.tanh(z + p[b_off + j]))
            h = h_new
            off = b_off + H

        # ---- output layer: 5 -> 1 (affine fold applied, no activation) ------
        w_off = off
        b_off = off + H
        z = h[0] * p[w_off + 0]
        for i in range(1, H):
            z = z + h[i] * p[w_off + i]
        out_ref[pl.ds(r0, CHUNK), :] = z + p[b_off]
        return carry

    lax.fori_loop(0, n_chunks, chunk_body, 0)


# -----------------------------------------------------------------------------
# Host-side parameter packing (with sigmoid affine fold)
# -----------------------------------------------------------------------------
def pack_params(params):
    """Flatten the 12 weight/bias tensors into one (141,) f32 vector, folding the
    sigmoid's 0.5-scale / +0.5-offset into the weights so the kernel uses tanh only.

    With a_k = tanh(0.5 * z_k) and h_k = sigmoid(z_k) = 0.5*a_k + 0.5:
      layer1:   a1 = tanh((0.5*W1) u + 0.5*b1)
      hidden:   a  = tanh((0.25*W) a_prev + 0.25*colsum(W) + 0.5*b)
      output:   y  = (0.5*Wo) a5 + 0.5*sum(Wo) + bo
    which is mathematically identical to the original sigmoid network.
    """
    w1, b1, w2, b2, w3, b3, w4, b4, w5, b5, wo, bo = [
        jnp.asarray(a, jnp.float32) for a in params]
    pieces = [(0.5 * w1).reshape(-1), (0.5 * b1).reshape(-1)]
    for w, b in ((w2, b2), (w3, b3), (w4, b4), (w5, b5)):
        pieces.append((0.25 * w).reshape(-1))
        pieces.append(0.25 * jnp.sum(w, axis=0) + 0.5 * b.reshape(-1))
    pieces.append((0.5 * wo).reshape(-1))
    pieces.append(0.5 * jnp.sum(wo, axis=0) + bo.reshape(-1))
    flat = jnp.concatenate(pieces)
    assert flat.shape == (N_PARAMS,)
    return flat


# -----------------------------------------------------------------------------
# Pallas call wrappers
# -----------------------------------------------------------------------------
def _forward_slabs(x2d, t2d, flat_params, tb):
    """Run the kernel on pre-slabbed (rows, 128) inputs. rows % tb == 0, tb % CHUNK == 0."""
    rows_padded = x2d.shape[0]
    assert rows_padded % tb == 0 and tb % CHUNK == 0
    grid = (rows_padded // tb,)
    return pl.pallas_call(
        pinn_mlp_kernel,
        out_shape=jax.ShapeDtypeStruct((rows_padded, LANES), jnp.float32),
        grid=grid,
        in_specs=[
            # All 141 folded params live in SMEM, read as scalars (no per-step VMEM DMA).
            pl.BlockSpec(memory_space=pltpu.MemorySpace.SMEM),
            pl.BlockSpec((tb, LANES), lambda i: (i, 0)),
            pl.BlockSpec((tb, LANES), lambda i: (i, 0)),
        ],
        out_specs=pl.BlockSpec((tb, LANES), lambda i: (i, 0)),
        compiler_params=pltpu.CompilerParams(
            dimension_semantics=("parallel",),
            vmem_limit_bytes=32 << 20),
    )(flat_params, x2d, t2d)


def net_forward(x, t, params, block_rows=2048):
    """x, t: (N, 1) float32 column vectors (same contract as the PyTorch module).

    Callers with a hot loop should pre-slab x/t to (rows, 128) once and use
    _forward_slabs directly to avoid the per-call pad/reshape HBM traffic.
    """
    N = x.shape[0]
    flat_params = pack_params(params)  # (141,), fold applied

    # Lane-dense layout: fold the batch into (rows, 128) slabs.
    rows_needed = max(1, -(-N // LANES))                 # ceil(N / 128)
    tb_cap = max(CHUNK, _round_up(block_rows, CHUNK))
    if rows_needed >= 2 * CHUNK:
        # At least 2 parallel grid steps so v7x's 2nd TensorCore gets work.
        n_steps = max(-(-rows_needed // tb_cap), 2)
    else:
        n_steps = 1
    tb = min(tb_cap, _round_up(-(-rows_needed // n_steps), CHUNK))
    rows_padded = n_steps * tb
    n_pad = rows_padded * LANES

    x2d = jnp.pad(jnp.ravel(x).astype(jnp.float32),
                  (0, n_pad - N)).reshape(rows_padded, LANES)
    t2d = jnp.pad(jnp.ravel(t).astype(jnp.float32),
                  (0, n_pad - N)).reshape(rows_padded, LANES)

    out2d = _forward_slabs(x2d, t2d, flat_params, tb)
    return out2d.reshape(n_pad, 1)[:N]


# -----------------------------------------------------------------------------
# Reference + init (mirrors PyTorch nn.Linear defaults)
# -----------------------------------------------------------------------------
def init_params(key):
    sizes = [(2, 5), (5, 5), (5, 5), (5, 5), (5, 5), (5, 1)]  # (fan_in, fan_out)
    params = []
    for (fan_in, fan_out) in sizes:
        key, kw, kb = jax.random.split(key, 3)
        bound = 1.0 / jnp.sqrt(jnp.float32(fan_in))
        w = jax.random.uniform(kw, (fan_in, fan_out), jnp.float32, -bound, bound)
        b = jax.random.uniform(kb, (1, fan_out), jnp.float32, -bound, bound)
        params += [w, b]
    return tuple(params)


def net_forward_ref(x, t, params):
    """Pure-JAX reference of the PyTorch forward (true sigmoid, un-folded weights)."""
    w1, b1, w2, b2, w3, b3, w4, b4, w5, b5, wo, bo = params
    h = jnp.concatenate([x, t], axis=1)
    h = jax.nn.sigmoid(h @ w1 + b1)
    h = jax.nn.sigmoid(h @ w2 + b2)
    h = jax.nn.sigmoid(h @ w3 + b3)
    h = jax.nn.sigmoid(h @ w4 + b4)
    h = jax.nn.sigmoid(h @ w5 + b5)
    return h @ wo + bo


if __name__ == "__main__":
    key = jax.random.PRNGKey(0)
    kp, kx, kt = jax.random.split(key, 3)
    params = init_params(kp)

    # Case 1: small ragged batch (single grid step, single inner chunk, lane padding).
    N1 = 300
    x1 = jax.random.uniform(kx, (N1, 1), jnp.float32)
    t1 = jax.random.uniform(kt, (N1, 1), jnp.float32)
    out1 = jax.block_until_ready(net_forward(x1, t1, params))
    ref1 = net_forward_ref(x1, t1, params)
    assert out1.shape == (N1, 1)
    err1 = float(jnp.max(jnp.abs(out1 - ref1)))
    assert err1 < 2e-4, err1

    # Case 2: multi-step parallel grid + multiple 16-row chunks per block.
    N2 = 8192
    kx2, kt2 = jax.random.split(jax.random.PRNGKey(1))
    x2 = jax.random.uniform(kx2, (N2, 1), jnp.float32)
    t2 = jax.random.uniform(kt2, (N2, 1), jnp.float32)
    out2 = jax.block_until_ready(net_forward(x2, t2, params, block_rows=32))
    ref2 = net_forward_ref(x2, t2, params)
    assert out2.shape == (N2, 1)
    err2 = float(jnp.max(jnp.abs(out2 - ref2)))
    assert err2 < 2e-4, err2

    print("KERNEL_OK")
</pallas_src>

<mosaic_0001>
module attributes {stable_mosaic.version = 11 : i64} {
  func.func @pinn_mlp_kernel(%arg0: i32, %arg1: memref<141xf32, #tpu.memory_space<smem>>, %arg2: memref<16x128xf32, #tpu.memory_space<vmem>>, %arg3: memref<16x128xf32, #tpu.memory_space<vmem>>, %arg4: memref<16x128xf32, #tpu.memory_space<vmem>>) attributes {dimension_semantics = [#tpu.dimension_semantics<parallel>], iteration_bounds = array<i64: 1>, scalar_prefetch = 0 : i64, scratch_operands = 0 : i64, tpu.core_type = #tpu.core_type<tc>, window_params = [{transform_indices = @transform_0, window_bounds = array<i64: 141>}, {transform_indices = @transform_1, window_bounds = array<i64: 16, 128>}, {transform_indices = @transform_2, window_bounds = array<i64: 16, 128>}, {transform_indices = @transform_3, window_bounds = array<i64: 16, 128>}]} {
    %c0 = arith.constant 0 : index
    %0 = memref.load %arg1[%c0] : memref<141xf32, #tpu.memory_space<smem>>
    %c1 = arith.constant 1 : index
    %1 = memref.load %arg1[%c1] : memref<141xf32, #tpu.memory_space<smem>>
    %c2 = arith.constant 2 : index
    %2 = memref.load %arg1[%c2] : memref<141xf32, #tpu.memory_space<smem>>
    %c3 = arith.constant 3 : index
    %3 = memref.load %arg1[%c3] : memref<141xf32, #tpu.memory_space<smem>>
    %c4 = arith.constant 4 : index
    %4 = memref.load %arg1[%c4] : memref<141xf32, #tpu.memory_space<smem>>
    %c5 = arith.constant 5 : index
    %5 = memref.load %arg1[%c5] : memref<141xf32, #tpu.memory_space<smem>>
    %c6 = arith.constant 6 : index
    %6 = memref.load %arg1[%c6] : memref<141xf32, #tpu.memory_space<smem>>
    %c7 = arith.constant 7 : index
    %7 = memref.load %arg1[%c7] : memref<141xf32, #tpu.memory_space<smem>>
    %c8 = arith.constant 8 : index
    %8 = memref.load %arg1[%c8] : memref<141xf32, #tpu.memory_space<smem>>
    %c9 = arith.constant 9 : index
    %9 = memref.load %arg1[%c9] : memref<141xf32, #tpu.memory_space<smem>>
    %c10 = arith.constant 10 : index
    %10 = memref.load %arg1[%c10] : memref<141xf32, #tpu.memory_space<smem>>
    %c11 = arith.constant 11 : index
    %11 = memref.load %arg1[%c11] : memref<141xf32, #tpu.memory_space<smem>>
    %c12 = arith.constant 12 : index
    %12 = memref.load %arg1[%c12] : memref<141xf32, #tpu.memory_space<smem>>
    %c13 = arith.constant 13 : index
    %13 = memref.load %arg1[%c13] : memref<141xf32, #tpu.memory_space<smem>>
    %c14 = arith.constant 14 : index
    %14 = memref.load %arg1[%c14] : memref<141xf32, #tpu.memory_space<smem>>
    %c15 = arith.constant 15 : index
    %15 = memref.load %arg1[%c15] : memref<141xf32, #tpu.memory_space<smem>>
    %c16 = arith.constant 16 : index
    %16 = memref.load %arg1[%c16] : memref<141xf32, #tpu.memory_space<smem>>
    %c17 = arith.constant 17 : index
    %17 = memref.load %arg1[%c17] : memref<141xf32, #tpu.memory_space<smem>>
    %c18 = arith.constant 18 : index
    %18 = memref.load %arg1[%c18] : memref<141xf32, #tpu.memory_space<smem>>
    %c19 = arith.constant 19 : index
    %19 = memref.load %arg1[%c19] : memref<141xf32, #tpu.memory_space<smem>>
    %c20 = arith.constant 20 : index
    %20 = memref.load %arg1[%c20] : memref<141xf32, #tpu.memory_space<smem>>
    %c21 = arith.constant 21 : index
    %21 = memref.load %arg1[%c21] : memref<141xf32, #tpu.memory_space<smem>>
    %c22 = arith.constant 22 : index
    %22 = memref.load %arg1[%c22] : memref<141xf32, #tpu.memory_space<smem>>
    %c23 = arith.constant 23 : index
    %23 = memref.load %arg1[%c23] : memref<141xf32, #tpu.memory_space<smem>>
    %c24 = arith.constant 24 : index
    %24 = memref.load %arg1[%c24] : memref<141xf32, #tpu.memory_space<smem>>
    %c25 = arith.constant 25 : index
    %25 = memref.load %arg1[%c25] : memref<141xf32, #tpu.memory_space<smem>>
    %c26 = arith.constant 26 : index
    %26 = memref.load %arg1[%c26] : memref<141xf32, #tpu.memory_space<smem>>
    %c27 = arith.constant 27 : index
    %27 = memref.load %arg1[%c27] : memref<141xf32, #tpu.memory_space<smem>>
    %c28 = arith.constant 28 : index
    %28 = memref.load %arg1[%c28] : memref<141xf32, #tpu.memory_space<smem>>
    %c29 = arith.constant 29 : index
    %29 = memref.load %arg1[%c29] : memref<141xf32, #tpu.memory_space<smem>>
    %c30 = arith.constant 30 : index
    %30 = memref.load %arg1[%c30] : memref<141xf32, #tpu.memory_space<smem>>
    %c31 = arith.constant 31 : index
    %31 = memref.load %arg1[%c31] : memref<141xf32, #tpu.memory_space<smem>>
    %c32 = arith.constant 32 : index
    %32 = memref.load %arg1[%c32] : memref<141xf32, #tpu.memory_space<smem>>
    %c33 = arith.constant 33 : index
    %33 = memref.load %arg1[%c33] : memref<141xf32, #tpu.memory_space<smem>>
    %c34 = arith.constant 34 : index
    %34 = memref.load %arg1[%c34] : memref<141xf32, #tpu.memory_space<smem>>
    %c35 = arith.constant 35 : index
    %35 = memref.load %arg1[%c35] : memref<141xf32, #tpu.memory_space<smem>>
    %c36 = arith.constant 36 : index
    %36 = memref.load %arg1[%c36] : memref<141xf32, #tpu.memory_space<smem>>
    %c37 = arith.constant 37 : index
    %37 = memref.load %arg1[%c37] : memref<141xf32, #tpu.memory_space<smem>>
    %c38 = arith.constant 38 : index
    %38 = memref.load %arg1[%c38] : memref<141xf32, #tpu.memory_space<smem>>
    %c39 = arith.constant 39 : index
    %39 = memref.load %arg1[%c39] : memref<141xf32, #tpu.memory_space<smem>>
    %c40 = arith.constant 40 : index
    %40 = memref.load %arg1[%c40] : memref<141xf32, #tpu.memory_space<smem>>
    %c41 = arith.constant 41 : index
    %41 = memref.load %arg1[%c41] : memref<141xf32, #tpu.memory_space<smem>>
    %c42 = arith.constant 42 : index
    %42 = memref.load %arg1[%c42] : memref<141xf32, #tpu.memory_space<smem>>
    %c43 = arith.constant 43 : index
    %43 = memref.load %arg1[%c43] : memref<141xf32, #tpu.memory_space<smem>>
    %c44 = arith.constant 44 : index
    %44 = memref.load %arg1[%c44] : memref<141xf32, #tpu.memory_space<smem>>
    %c45 = arith.constant 45 : index
    %45 = memref.load %arg1[%c45] : memref<141xf32, #tpu.memory_space<smem>>
    %c46 = arith.constant 46 : index
    %46 = memref.load %arg1[%c46] : memref<141xf32, #tpu.memory_space<smem>>
    %c47 = arith.constant 47 : index
    %47 = memref.load %arg1[%c47] : memref<141xf32, #tpu.memory_space<smem>>
    %c48 = arith.constant 48 : index
    %48 = memref.load %arg1[%c48] : memref<141xf32, #tpu.memory_space<smem>>
    %c49 = arith.constant 49 : index
    %49 = memref.load %arg1[%c49] : memref<141xf32, #tpu.memory_space<smem>>
    %c50 = arith.constant 50 : index
    %50 = memref.load %arg1[%c50] : memref<141xf32, #tpu.memory_space<smem>>
    %c51 = arith.constant 51 : index
    %51 = memref.load %arg1[%c51] : memref<141xf32, #tpu.memory_space<smem>>
    %c52 = arith.constant 52 : index
    %52 = memref.load %arg1[%c52] : memref<141xf32, #tpu.memory_space<smem>>
    %c53 = arith.constant 53 : index
    %53 = memref.load %arg1[%c53] : memref<141xf32, #tpu.memory_space<smem>>
    %c54 = arith.constant 54 : index
    %54 = memref.load %arg1[%c54] : memref<141xf32, #tpu.memory_space<smem>>
    %c55 = arith.constant 55 : index
    %55 = memref.load %arg1[%c55] : memref<141xf32, #tpu.memory_space<smem>>
    %c56 = arith.constant 56 : index
    %56 = memref.load %arg1[%c56] : memref<141xf32, #tpu.memory_space<smem>>
    %c57 = arith.constant 57 : index
    %57 = memref.load %arg1[%c57] : memref<141xf32, #tpu.memory_space<smem>>
    %c58 = arith.constant 58 : index
    %58 = memref.load %arg1[%c58] : memref<141xf32, #tpu.memory_space<smem>>
    %c59 = arith.constant 59 : index
    %59 = memref.load %arg1[%c59] : memref<141xf32, #tpu.memory_space<smem>>
    %c60 = arith.constant 60 : index
    %60 = memref.load %arg1[%c60] : memref<141xf32, #tpu.memory_space<smem>>
    %c61 = arith.constant 61 : index
    %61 = memref.load %arg1[%c61] : memref<141xf32, #tpu.memory_space<smem>>
    %c62 = arith.constant 62 : index
    %62 = memref.load %arg1[%c62] : memref<141xf32, #tpu.memory_space<smem>>
    %c63 = arith.constant 63 : index
    %63 = memref.load %arg1[%c63] : memref<141xf32, #tpu.memory_space<smem>>
    %c64 = arith.constant 64 : index
    %64 = memref.load %arg1[%c64] : memref<141xf32, #tpu.memory_space<smem>>
    %c65 = arith.constant 65 : index
    %65 = memref.load %arg1[%c65] : memref<141xf32, #tpu.memory_space<smem>>
    %c66 = arith.constant 66 : index
    %66 = memref.load %arg1[%c66] : memref<141xf32, #tpu.memory_space<smem>>
    %c67 = arith.constant 67 : index
    %67 = memref.load %arg1[%c67] : memref<141xf32, #tpu.memory_space<smem>>
    %c68 = arith.constant 68 : index
    %68 = memref.load %arg1[%c68] : memref<141xf32, #tpu.memory_space<smem>>
    %c69 = arith.constant 69 : index
    %69 = memref.load %arg1[%c69] : memref<141xf32, #tpu.memory_space<smem>>
    %c70 = arith.constant 70 : index
    %70 = memref.load %arg1[%c70] : memref<141xf32, #tpu.memory_space<smem>>
    %c71 = arith.constant 71 : index
    %71 = memref.load %arg1[%c71] : memref<141xf32, #tpu.memory_space<smem>>
    %c72 = arith.constant 72 : index
    %72 = memref.load %arg1[%c72] : memref<141xf32, #tpu.memory_space<smem>>
    %c73 = arith.constant 73 : index
    %73 = memref.load %arg1[%c73] : memref<141xf32, #tpu.memory_space<smem>>
    %c74 = arith.constant 74 : index
    %74 = memref.load %arg1[%c74] : memref<141xf32, #tpu.memory_space<smem>>
    %c75 = arith.constant 75 : index
    %75 = memref.load %arg1[%c75] : memref<141xf32, #tpu.memory_space<smem>>
    %c76 = arith.constant 76 : index
    %76 = memref.load %arg1[%c76] : memref<141xf32, #tpu.memory_space<smem>>
    %c77 = arith.constant 77 : index
    %77 = memref.load %arg1[%c77] : memref<141xf32, #tpu.memory_space<smem>>
    %c78 = arith.constant 78 : index
    %78 = memref.load %arg1[%c78] : memref<141xf32, #tpu.memory_space<smem>>
    %c79 = arith.constant 79 : index
    %79 = memref.load %arg1[%c79] : memref<141xf32, #tpu.memory_space<smem>>
    %c80 = arith.constant 80 : index
    %80 = memref.load %arg1[%c80] : memref<141xf32, #tpu.memory_space<smem>>
    %c81 = arith.constant 81 : index
    %81 = memref.load %arg1[%c81] : memref<141xf32, #tpu.memory_space<smem>>
    %c82 = arith.constant 82 : index
    %82 = memref.load %arg1[%c82] : memref<141xf32, #tpu.memory_space<smem>>
    %c83 = arith.constant 83 : index
    %83 = memref.load %arg1[%c83] : memref<141xf32, #tpu.memory_space<smem>>
    %c84 = arith.constant 84 : index
    %84 = memref.load %arg1[%c84] : memref<141xf32, #tpu.memory_space<smem>>
    %c85 = arith.constant 85 : index
    %85 = memref.load %arg1[%c85] : memref<141xf32, #tpu.memory_space<smem>>
    %c86 = arith.constant 86 : index
    %86 = memref.load %arg1[%c86] : memref<141xf32, #tpu.memory_space<smem>>
    %c87 = arith.constant 87 : index
    %87 = memref.load %arg1[%c87] : memref<141xf32, #tpu.memory_space<smem>>
    %c88 = arith.constant 88 : index
    %88 = memref.load %arg1[%c88] : memref<141xf32, #tpu.memory_space<smem>>
    %c89 = arith.constant 89 : index
    %89 = memref.load %arg1[%c89] : memref<141xf32, #tpu.memory_space<smem>>
    %c90 = arith.constant 90 : index
    %90 = memref.load %arg1[%c90] : memref<141xf32, #tpu.memory_space<smem>>
    %c91 = arith.constant 91 : index
    %91 = memref.load %arg1[%c91] : memref<141xf32, #tpu.memory_space<smem>>
    %c92 = arith.constant 92 : index
    %92 = memref.load %arg1[%c92] : memref<141xf32, #tpu.memory_space<smem>>
    %c93 = arith.constant 93 : index
    %93 = memref.load %arg1[%c93] : memref<141xf32, #tpu.memory_space<smem>>
    %c94 = arith.constant 94 : index
    %94 = memref.load %arg1[%c94] : memref<141xf32, #tpu.memory_space<smem>>
    %c95 = arith.constant 95 : index
    %95 = memref.load %arg1[%c95] : memref<141xf32, #tpu.memory_space<smem>>
    %c96 = arith.constant 96 : index
    %96 = memref.load %arg1[%c96] : memref<141xf32, #tpu.memory_space<smem>>
    %c97 = arith.constant 97 : index
    %97 = memref.load %arg1[%c97] : memref<141xf32, #tpu.memory_space<smem>>
    %c98 = arith.constant 98 : index
    %98 = memref.load %arg1[%c98] : memref<141xf32, #tpu.memory_space<smem>>
    %c99 = arith.constant 99 : index
    %99 = memref.load %arg1[%c99] : memref<141xf32, #tpu.memory_space<smem>>
    %c100 = arith.constant 100 : index
    %100 = memref.load %arg1[%c100] : memref<141xf32, #tpu.memory_space<smem>>
    %c101 = arith.constant 101 : index
    %101 = memref.load %arg1[%c101] : memref<141xf32, #tpu.memory_space<smem>>
    %c102 = arith.constant 102 : index
    %102 = memref.load %arg1[%c102] : memref<141xf32, #tpu.memory_space<smem>>
    %c103 = arith.constant 103 : index
    %103 = memref.load %arg1[%c103] : memref<141xf32, #tpu.memory_space<smem>>
    %c104 = arith.constant 104 : index
    %104 = memref.load %arg1[%c104] : memref<141xf32, #tpu.memory_space<smem>>
    %c105 = arith.constant 105 : index
    %105 = memref.load %arg1[%c105] : memref<141xf32, #tpu.memory_space<smem>>
    %c106 = arith.constant 106 : index
    %106 = memref.load %arg1[%c106] : memref<141xf32, #tpu.memory_space<smem>>
    %c107 = arith.constant 107 : index
    %107 = memref.load %arg1[%c107] : memref<141xf32, #tpu.memory_space<smem>>
    %c108 = arith.constant 108 : index
    %108 = memref.load %arg1[%c108] : memref<141xf32, #tpu.memory_space<smem>>
    %c109 = arith.constant 109 : index
    %109 = memref.load %arg1[%c109] : memref<141xf32, #tpu.memory_space<smem>>
    %c110 = arith.constant 110 : index
    %110 = memref.load %arg1[%c110] : memref<141xf32, #tpu.memory_space<smem>>
    %c111 = arith.constant 111 : index
    %111 = memref.load %arg1[%c111] : memref<141xf32, #tpu.memory_space<smem>>
    %c112 = arith.constant 112 : index
    %112 = memref.load %arg1[%c112] : memref<141xf32, #tpu.memory_space<smem>>
    %c113 = arith.constant 113 : index
    %113 = memref.load %arg1[%c113] : memref<141xf32, #tpu.memory_space<smem>>
    %c114 = arith.constant 114 : index
    %114 = memref.load %arg1[%c114] : memref<141xf32, #tpu.memory_space<smem>>
    %c115 = arith.constant 115 : index
    %115 = memref.load %arg1[%c115] : memref<141xf32, #tpu.memory_space<smem>>
    %c116 = arith.constant 116 : index
    %116 = memref.load %arg1[%c116] : memref<141xf32, #tpu.memory_space<smem>>
    %c117 = arith.constant 117 : index
    %117 = memref.load %arg1[%c117] : memref<141xf32, #tpu.memory_space<smem>>
    %c118 = arith.constant 118 : index
    %118 = memref.load %arg1[%c118] : memref<141xf32, #tpu.memory_space<smem>>
    %c119 = arith.constant 119 : index
    %119 = memref.load %arg1[%c119] : memref<141xf32, #tpu.memory_space<smem>>
    %c120 = arith.constant 120 : index
    %120 = memref.load %arg1[%c120] : memref<141xf32, #tpu.memory_space<smem>>
    %c121 = arith.constant 121 : index
    %121 = memref.load %arg1[%c121] : memref<141xf32, #tpu.memory_space<smem>>
    %c122 = arith.constant 122 : index
    %122 = memref.load %arg1[%c122] : memref<141xf32, #tpu.memory_space<smem>>
    %c123 = arith.constant 123 : index
    %123 = memref.load %arg1[%c123] : memref<141xf32, #tpu.memory_space<smem>>
    %c124 = arith.constant 124 : index
    %124 = memref.load %arg1[%c124] : memref<141xf32, #tpu.memory_space<smem>>
    %c125 = arith.constant 125 : index
    %125 = memref.load %arg1[%c125] : memref<141xf32, #tpu.memory_space<smem>>
    %c126 = arith.constant 126 : index
    %126 = memref.load %arg1[%c126] : memref<141xf32, #tpu.memory_space<smem>>
    %c127 = arith.constant 127 : index
    %127 = memref.load %arg1[%c127] : memref<141xf32, #tpu.memory_space<smem>>
    %c128 = arith.constant 128 : index
    %128 = memref.load %arg1[%c128] : memref<141xf32, #tpu.memory_space<smem>>
    %c129 = arith.constant 129 : index
    %129 = memref.load %arg1[%c129] : memref<141xf32, #tpu.memory_space<smem>>
    %c130 = arith.constant 130 : index
    %130 = memref.load %arg1[%c130] : memref<141xf32, #tpu.memory_space<smem>>
    %c131 = arith.constant 131 : index
    %131 = memref.load %arg1[%c131] : memref<141xf32, #tpu.memory_space<smem>>
    %c132 = arith.constant 132 : index
    %132 = memref.load %arg1[%c132] : memref<141xf32, #tpu.memory_space<smem>>
    %c133 = arith.constant 133 : index
    %133 = memref.load %arg1[%c133] : memref<141xf32, #tpu.memory_space<smem>>
    %c134 = arith.constant 134 : index
    %134 = memref.load %arg1[%c134] : memref<141xf32, #tpu.memory_space<smem>>
    %c135 = arith.constant 135 : index
    %135 = memref.load %arg1[%c135] : memref<141xf32, #tpu.memory_space<smem>>
    %c136 = arith.constant 136 : index
    %136 = memref.load %arg1[%c136] : memref<141xf32, #tpu.memory_space<smem>>
    %c137 = arith.constant 137 : index
    %137 = memref.load %arg1[%c137] : memref<141xf32, #tpu.memory_space<smem>>
    %c138 = arith.constant 138 : index
    %138 = memref.load %arg1[%c138] : memref<141xf32, #tpu.memory_space<smem>>
    %c139 = arith.constant 139 : index
    %139 = memref.load %arg1[%c139] : memref<141xf32, #tpu.memory_space<smem>>
    %c140 = arith.constant 140 : index
    %140 = memref.load %arg1[%c140] : memref<141xf32, #tpu.memory_space<smem>>
    %c0_i32 = arith.constant 0 : i32
    %c16_i32 = arith.constant 16 : i32
    %141 = arith.muli %c0_i32, %c16_i32 : i32
    %142 = tpu.assume_multiple %141, 16 : i32
    %143 = arith.index_cast %142 : i32 to index
    %c0_0 = arith.constant 0 : index
    %144 = vector.load %arg2[%143, %c0_0] : memref<16x128xf32, #tpu.memory_space<vmem>>, vector<16x128xf32>
    %145 = arith.index_cast %142 : i32 to index
    %c0_1 = arith.constant 0 : index
    %146 = vector.load %arg3[%145, %c0_1] : memref<16x128xf32, #tpu.memory_space<vmem>>, vector<16x128xf32>
    %147 = vector.broadcast %0 : f32 to vector<16x128xf32>
    %148 = arith.mulf %144, %147 : vector<16x128xf32>
    %149 = vector.broadcast %5 : f32 to vector<16x128xf32>
    %150 = arith.mulf %146, %149 : vector<16x128xf32>
    %151 = arith.addf %148, %150 : vector<16x128xf32>
    %152 = vector.broadcast %10 : f32 to vector<16x128xf32>
    %153 = arith.addf %151, %152 : vector<16x128xf32>
    %154 = math.tanh %153 : vector<16x128xf32>
    %155 = vector.broadcast %1 : f32 to vector<16x128xf32>
    %156 = arith.mulf %144, %155 : vector<16x128xf32>
    %157 = vector.broadcast %6 : f32 to vector<16x128xf32>
    %158 = arith.mulf %146, %157 : vector<16x128xf32>
    %159 = arith.addf %156, %158 : vector<16x128xf32>
    %160 = vector.broadcast %11 : f32 to vector<16x128xf32>
    %161 = arith.addf %159, %160 : vector<16x128xf32>
    %162 = math.tanh %161 : vector<16x128xf32>
    %163 = vector.broadcast %2 : f32 to vector<16x128xf32>
    %164 = arith.mulf %144, %163 : vector<16x128xf32>
    %165 = vector.broadcast %7 : f32 to vector<16x128xf32>
    %166 = arith.mulf %146, %165 : vector<16x128xf32>
    %167 = arith.addf %164, %166 : vector<16x128xf32>
    %168 = vector.broadcast %12 : f32 to vector<16x128xf32>
    %169 = arith.addf %167, %168 : vector<16x128xf32>
    %170 = math.tanh %169 : vector<16x128xf32>
    %171 = vector.broadcast %3 : f32 to vector<16x128xf32>
    %172 = arith.mulf %144, %171 : vector<16x128xf32>
    %173 = vector.broadcast %8 : f32 to vector<16x128xf32>
    %174 = arith.mulf %146, %173 : vector<16x128xf32>
    %175 = arith.addf %172, %174 : vector<16x128xf32>
    %176 = vector.broadcast %13 : f32 to vector<16x128xf32>
    %177 = arith.addf %175, %176 : vector<16x128xf32>
    %178 = math.tanh %177 : vector<16x128xf32>
    %179 = vector.broadcast %4 : f32 to vector<16x128xf32>
    %180 = arith.mulf %144, %179 : vector<16x128xf32>
    %181 = vector.broadcast %9 : f32 to vector<16x128xf32>
    %182 = arith.mulf %146, %181 : vector<16x128xf32>
    %183 = arith.addf %180, %182 : vector<16x128xf32>
    %184 = vector.broadcast %14 : f32 to vector<16x128xf32>
    %185 = arith.addf %183, %184 : vector<16x128xf32>
    %186 = math.tanh %185 : vector<16x128xf32>
    %187 = vector.broadcast %15 : f32 to vector<16x128xf32>
    %188 = arith.mulf %154, %187 : vector<16x128xf32>
    %189 = vector.broadcast %20 : f32 to vector<16x128xf32>
    %190 = arith.mulf %162, %189 : vector<16x128xf32>
    %191 = arith.addf %188, %190 : vector<16x128xf32>
    %192 = vector.broadcast %25 : f32 to vector<16x128xf32>
    %193 = arith.mulf %170, %192 : vector<16x128xf32>
    %194 = arith.addf %191, %193 : vector<16x128xf32>
    %195 = vector.broadcast %30 : f32 to vector<16x128xf32>
    %196 = arith.mulf %178, %195 : vector<16x128xf32>
    %197 = arith.addf %194, %196 : vector<16x128xf32>
    %198 = vector.broadcast %35 : f32 to vector<16x128xf32>
    %199 = arith.mulf %186, %198 : vector<16x128xf32>
    %200 = arith.addf %197, %199 : vector<16x128xf32>
    %201 = vector.broadcast %40 : f32 to vector<16x128xf32>
    %202 = arith.addf %200, %201 : vector<16x128xf32>
    %203 = math.tanh %202 : vector<16x128xf32>
    %204 = vector.broadcast %16 : f32 to vector<16x128xf32>
    %205 = arith.mulf %154, %204 : vector<16x128xf32>
    %206 = vector.broadcast %21 : f32 to vector<16x128xf32>
    %207 = arith.mulf %162, %206 : vector<16x128xf32>
    %208 = arith.addf %205, %207 : vector<16x128xf32>
    %209 = vector.broadcast %26 : f32 to vector<16x128xf32>
    %210 = arith.mulf %170, %209 : vector<16x128xf32>
    %211 = arith.addf %208, %210 : vector<16x128xf32>
    %212 = vector.broadcast %31 : f32 to vector<16x128xf32>
    %213 = arith.mulf %178, %212 : vector<16x128xf32>
    %214 = arith.addf %211, %213 : vector<16x128xf32>
    %215 = vector.broadcast %36 : f32 to vector<16x128xf32>
    %216 = arith.mulf %186, %215 : vector<16x128xf32>
    %217 = arith.addf %214, %216 : vector<16x128xf32>
    %218 = vector.broadcast %41 : f32 to vector<16x128xf32>
    %219 = arith.addf %217, %218 : vector<16x128xf32>
    %220 = math.tanh %219 : vector<16x128xf32>
    %221 = vector.broadcast %17 : f32 to vector<16x128xf32>
    %222 = arith.mulf %154, %221 : vector<16x128xf32>
    %223 = vector.broadcast %22 : f32 to vector<16x128xf32>
    %224 = arith.mulf %162, %223 : vector<16x128xf32>
    %225 = arith.addf %222, %224 : vector<16x128xf32>
    %226 = vector.broadcast %27 : f32 to vector<16x128xf32>
    %227 = arith.mulf %170, %226 : vector<16x128xf32>
    %228 = arith.addf %225, %227 : vector<16x128xf32>
    %229 = vector.broadcast %32 : f32 to vector<16x128xf32>
    %230 = arith.mulf %178, %229 : vector<16x128xf32>
    %231 = arith.addf %228, %230 : vector<16x128xf32>
    %232 = vector.broadcast %37 : f32 to vector<16x128xf32>
    %233 = arith.mulf %186, %232 : vector<16x128xf32>
    %234 = arith.addf %231, %233 : vector<16x128xf32>
    %235 = vector.broadcast %42 : f32 to vector<16x128xf32>
    %236 = arith.addf %234, %235 : vector<16x128xf32>
    %237 = math.tanh %236 : vector<16x128xf32>
    %238 = vector.broadcast %18 : f32 to vector<16x128xf32>
    %239 = arith.mulf %154, %238 : vector<16x128xf32>
    %240 = vector.broadcast %23 : f32 to vector<16x128xf32>
    %241 = arith.mulf %162, %240 : vector<16x128xf32>
    %242 = arith.addf %239, %241 : vector<16x128xf32>
    %243 = vector.broadcast %28 : f32 to vector<16x128xf32>
    %244 = arith.mulf %170, %243 : vector<16x128xf32>
    %245 = arith.addf %242, %244 : vector<16x128xf32>
    %246 = vector.broadcast %33 : f32 to vector<16x128xf32>
    %247 = arith.mulf %178, %246 : vector<16x128xf32>
    %248 = arith.addf %245, %247 : vector<16x128xf32>
    %249 = vector.broadcast %38 : f32 to vector<16x128xf32>
    %250 = arith.mulf %186, %249 : vector<16x128xf32>
    %251 = arith.addf %248, %250 : vector<16x128xf32>
    %252 = vector.broadcast %43 : f32 to vector<16x128xf32>
    %253 = arith.addf %251, %252 : vector<16x128xf32>
    %254 = math.tanh %253 : vector<16x128xf32>
    %255 = vector.broadcast %19 : f32 to vector<16x128xf32>
    %256 = arith.mulf %154, %255 : vector<16x128xf32>
    %257 = vector.broadcast %24 : f32 to vector<16x128xf32>
    %258 = arith.mulf %162, %257 : vector<16x128xf32>
    %259 = arith.addf %256, %258 : vector<16x128xf32>
    %260 = vector.broadcast %29 : f32 to vector<16x128xf32>
    %261 = arith.mulf %170, %260 : vector<16x128xf32>
    %262 = arith.addf %259, %261 : vector<16x128xf32>
    %263 = vector.broadcast %34 : f32 to vector<16x128xf32>
    %264 = arith.mulf %178, %263 : vector<16x128xf32>
    %265 = arith.addf %262, %264 : vector<16x128xf32>
    %266 = vector.broadcast %39 : f32 to vector<16x128xf32>
    %267 = arith.mulf %186, %266 : vector<16x128xf32>
    %268 = arith.addf %265, %267 : vector<16x128xf32>
    %269 = vector.broadcast %44 : f32 to vector<16x128xf32>
    %270 = arith.addf %268, %269 : vector<16x128xf32>
    %271 = math.tanh %270 : vector<16x128xf32>
    %272 = vector.broadcast %45 : f32 to vector<16x128xf32>
    %273 = arith.mulf %203, %272 : vector<16x128xf32>
    %274 = vector.broadcast %50 : f32 to vector<16x128xf32>
    %275 = arith.mulf %220, %274 : vector<16x128xf32>
    %276 = arith.addf %273, %275 : vector<16x128xf32>
    %277 = vector.broadcast %55 : f32 to vector<16x128xf32>
    %278 = arith.mulf %237, %277 : vector<16x128xf32>
    %279 = arith.addf %276, %278 : vector<16x128xf32>
    %280 = vector.broadcast %60 : f32 to vector<16x128xf32>
    %281 = arith.mulf %254, %280 : vector<16x128xf32>
    %282 = arith.addf %279, %281 : vector<16x128xf32>
    %283 = vector.broadcast %65 : f32 to vector<16x128xf32>
    %284 = arith.mulf %271, %283 : vector<16x128xf32>
    %285 = arith.addf %282, %284 : vector<16x128xf32>
    %286 = vector.broadcast %70 : f32 to vector<16x128xf32>
    %287 = arith.addf %285, %286 : vector<16x128xf32>
    %288 = math.tanh %287 : vector<16x128xf32>
    %289 = vector.broadcast %46 : f32 to vector<16x128xf32>
    %290 = arith.mulf %203, %289 : vector<16x128xf32>
    %291 = vector.broadcast %51 : f32 to vector<16x128xf32>
    %292 = arith.mulf %220, %291 : vector<16x128xf32>
    %293 = arith.addf %290, %292 : vector<16x128xf32>
    %294 = vector.broadcast %56 : f32 to vector<16x128xf32>
    %295 = arith.mulf %237, %294 : vector<16x128xf32>
    %296 = arith.addf %293, %295 : vector<16x128xf32>
    %297 = vector.broadcast %61 : f32 to vector<16x128xf32>
    %298 = arith.mulf %254, %297 : vector<16x128xf32>
    %299 = arith.addf %296, %298 : vector<16x128xf32>
    %300 = vector.broadcast %66 : f32 to vector<16x128xf32>
    %301 = arith.mulf %271, %300 : vector<16x128xf32>
    %302 = arith.addf %299, %301 : vector<16x128xf32>
    %303 = vector.broadcast %71 : f32 to vector<16x128xf32>
    %304 = arith.addf %302, %303 : vector<16x128xf32>
    %305 = math.tanh %304 : vector<16x128xf32>
    %306 = vector.broadcast %47 : f32 to vector<16x128xf32>
    %307 = arith.mulf %203, %306 : vector<16x128xf32>
    %308 = vector.broadcast %52 : f32 to vector<16x128xf32>
    %309 = arith.mulf %220, %308 : vector<16x128xf32>
    %310 = arith.addf %307, %309 : vector<16x128xf32>
    %311 = vector.broadcast %57 : f32 to vector<16x128xf32>
    %312 = arith.mulf %237, %311 : vector<16x128xf32>
    %313 = arith.addf %310, %312 : vector<16x128xf32>
    %314 = vector.broadcast %62 : f32 to vector<16x128xf32>
    %315 = arith.mulf %254, %314 : vector<16x128xf32>
    %316 = arith.addf %313, %315 : vector<16x128xf32>
    %317 = vector.broadcast %67 : f32 to vector<16x128xf32>
    %318 = arith.mulf %271, %317 : vector<16x128xf32>
    %319 = arith.addf %316, %318 : vector<16x128xf32>
    %320 = vector.broadcast %72 : f32 to vector<16x128xf32>
    %321 = arith.addf %319, %320 : vector<16x128xf32>
    %322 = math.tanh %321 : vector<16x128xf32>
    %323 = vector.broadcast %48 : f32 to vector<16x128xf32>
    %324 = arith.mulf %203, %323 : vector<16x128xf32>
    %325 = vector.broadcast %53 : f32 to vector<16x128xf32>
    %326 = arith.mulf %220, %325 : vector<16x128xf32>
    %327 = arith.addf %324, %326 : vector<16x128xf32>
    %328 = vector.broadcast %58 : f32 to vector<16x128xf32>
    %329 = arith.mulf %237, %328 : vector<16x128xf32>
    %330 = arith.addf %327, %329 : vector<16x128xf32>
    %331 = vector.broadcast %63 : f32 to vector<16x128xf32>
    %332 = arith.mulf %254, %331 : vector<16x128xf32>
    %333 = arith.addf %330, %332 : vector<16x128xf32>
    %334 = vector.broadcast %68 : f32 to vector<16x128xf32>
    %335 = arith.mulf %271, %334 : vector<16x128xf32>
    %336 = arith.addf %333, %335 : vector<16x128xf32>
    %337 = vector.broadcast %73 : f32 to vector<16x128xf32>
    %338 = arith.addf %336, %337 : vector<16x128xf32>
    %339 = math.tanh %338 : vector<16x128xf32>
    %340 = vector.broadcast %49 : f32 to vector<16x128xf32>
    %341 = arith.mulf %203, %340 : vector<16x128xf32>
    %342 = vector.broadcast %54 : f32 to vector<16x128xf32>
    %343 = arith.mulf %220, %342 : vector<16x128xf32>
    %344 = arith.addf %341, %343 : vector<16x128xf32>
    %345 = vector.broadcast %59 : f32 to vector<16x128xf32>
    %346 = arith.mulf %237, %345 : vector<16x128xf32>
    %347 = arith.addf %344, %346 : vector<16x128xf32>
    %348 = vector.broadcast %64 : f32 to vector<16x128xf32>
    %349 = arith.mulf %254, %348 : vector<16x128xf32>
    %350 = arith.addf %347, %349 : vector<16x128xf32>
    %351 = vector.broadcast %69 : f32 to vector<16x128xf32>
    %352 = arith.mulf %271, %351 : vector<16x128xf32>
    %353 = arith.addf %350, %352 : vector<16x128xf32>
    %354 = vector.broadcast %74 : f32 to vector<16x128xf32>
    %355 = arith.addf %353, %354 : vector<16x128xf32>
    %356 = math.tanh %355 : vector<16x128xf32>
    %357 = vector.broadcast %75 : f32 to vector<16x128xf32>
    %358 = arith.mulf %288, %357 : vector<16x128xf32>
    %359 = vector.broadcast %80 : f32 to vector<16x128xf32>
    %360 = arith.mulf %305, %359 : vector<16x128xf32>
    %361 = arith.addf %358, %360 : vector<16x128xf32>
    %362 = vector.broadcast %85 : f32 to vector<16x128xf32>
    %363 = arith.mulf %322, %362 : vector<16x128xf32>
    %364 = arith.addf %361, %363 : vector<16x128xf32>
    %365 = vector.broadcast %90 : f32 to vector<16x128xf32>
    %366 = arith.mulf %339, %365 : vector<16x128xf32>
    %367 = arith.addf %364, %366 : vector<16x128xf32>
    %368 = vector.broadcast %95 : f32 to vector<16x128xf32>
    %369 = arith.mulf %356, %368 : vector<16x128xf32>
    %370 = arith.addf %367, %369 : vector<16x128xf32>
    %371 = vector.broadcast %100 : f32 to vector<16x128xf32>
    %372 = arith.addf %370, %371 : vector<16x128xf32>
    %373 = math.tanh %372 : vector<16x128xf32>
    %374 = vector.broadcast %76 : f32 to vector<16x128xf32>
    %375 = arith.mulf %288, %374 : vector<16x128xf32>
    %376 = vector.broadcast %81 : f32 to vector<16x128xf32>
    %377 = arith.mulf %305, %376 : vector<16x128xf32>
    %378 = arith.addf %375, %377 : vector<16x128xf32>
    %379 = vector.broadcast %86 : f32 to vector<16x128xf32>
    %380 = arith.mulf %322, %379 : vector<16x128xf32>
    %381 = arith.addf %378, %380 : vector<16x128xf32>
    %382 = vector.broadcast %91 : f32 to vector<16x128xf32>
    %383 = arith.mulf %339, %382 : vector<16x128xf32>
    %384 = arith.addf %381, %383 : vector<16x128xf32>
    %385 = vector.broadcast %96 : f32 to vector<16x128xf32>
    %386 = arith.mulf %356, %385 : vector<16x128xf32>
    %387 = arith.addf %384, %386 : vector<16x128xf32>
    %388 = vector.broadcast %101 : f32 to vector<16x128xf32>
    %389 = arith.addf %387, %388 : vector<16x128xf32>
    %390 = math.tanh %389 : vector<16x128xf32>
    %391 = vector.broadcast %77 : f32 to vector<16x128xf32>
    %392 = arith.mulf %288, %391 : vector<16x128xf32>
    %393 = vector.broadcast %82 : f32 to vector<16x128xf32>
    %394 = arith.mulf %305, %393 : vector<16x128xf32>
    %395 = arith.addf %392, %394 : vector<16x128xf32>
    %396 = vector.broadcast %87 : f32 to vector<16x128xf32>
    %397 = arith.mulf %322, %396 : vector<16x128xf32>
    %398 = arith.addf %395, %397 : vector<16x128xf32>
    %399 = vector.broadcast %92 : f32 to vector<16x128xf32>
    %400 = arith.mulf %339, %399 : vector<16x128xf32>
    %401 = arith.addf %398, %400 : vector<16x128xf32>
    %402 = vector.broadcast %97 : f32 to vector<16x128xf32>
    %403 = arith.mulf %356, %402 : vector<16x128xf32>
    %404 = arith.addf %401, %403 : vector<16x128xf32>
    %405 = vector.broadcast %102 : f32 to vector<16x128xf32>
    %406 = arith.addf %404, %405 : vector<16x128xf32>
    %407 = math.tanh %406 : vector<16x128xf32>
    %408 = vector.broadcast %78 : f32 to vector<16x128xf32>
    %409 = arith.mulf %288, %408 : vector<16x128xf32>
    %410 = vector.broadcast %83 : f32 to vector<16x128xf32>
    %411 = arith.mulf %305, %410 : vector<16x128xf32>
    %412 = arith.addf %409, %411 : vector<16x128xf32>
    %413 = vector.broadcast %88 : f32 to vector<16x128xf32>
    %414 = arith.mulf %322, %413 : vector<16x128xf32>
    %415 = arith.addf %412, %414 : vector<16x128xf32>
    %416 = vector.broadcast %93 : f32 to vector<16x128xf32>
    %417 = arith.mulf %339, %416 : vector<16x128xf32>
    %418 = arith.addf %415, %417 : vector<16x128xf32>
    %419 = vector.broadcast %98 : f32 to vector<16x128xf32>
    %420 = arith.mulf %356, %419 : vector<16x128xf32>
    %421 = arith.addf %418, %420 : vector<16x128xf32>
    %422 = vector.broadcast %103 : f32 to vector<16x128xf32>
    %423 = arith.addf %421, %422 : vector<16x128xf32>
    %424 = math.tanh %423 : vector<16x128xf32>
    %425 = vector.broadcast %79 : f32 to vector<16x128xf32>
    %426 = arith.mulf %288, %425 : vector<16x128xf32>
    %427 = vector.broadcast %84 : f32 to vector<16x128xf32>
    %428 = arith.mulf %305, %427 : vector<16x128xf32>
    %429 = arith.addf %426, %428 : vector<16x128xf32>
    %430 = vector.broadcast %89 : f32 to vector<16x128xf32>
    %431 = arith.mulf %322, %430 : vector<16x128xf32>
    %432 = arith.addf %429, %431 : vector<16x128xf32>
    %433 = vector.broadcast %94 : f32 to vector<16x128xf32>
    %434 = arith.mulf %339, %433 : vector<16x128xf32>
    %435 = arith.addf %432, %434 : vector<16x128xf32>
    %436 = vector.broadcast %99 : f32 to vector<16x128xf32>
    %437 = arith.mulf %356, %436 : vector<16x128xf32>
    %438 = arith.addf %435, %437 : vector<16x128xf32>
    %439 = vector.broadcast %104 : f32 to vector<16x128xf32>
    %440 = arith.addf %438, %439 : vector<16x128xf32>
    %441 = math.tanh %440 : vector<16x128xf32>
    %442 = vector.broadcast %105 : f32 to vector<16x128xf32>
    %443 = arith.mulf %373, %442 : vector<16x128xf32>
    %444 = vector.broadcast %110 : f32 to vector<16x128xf32>
    %445 = arith.mulf %390, %444 : vector<16x128xf32>
    %446 = arith.addf %443, %445 : vector<16x128xf32>
    %447 = vector.broadcast %115 : f32 to vector<16x128xf32>
    %448 = arith.mulf %407, %447 : vector<16x128xf32>
    %449 = arith.addf %446, %448 : vector<16x128xf32>
    %450 = vector.broadcast %120 : f32 to vector<16x128xf32>
    %451 = arith.mulf %424, %450 : vector<16x128xf32>
    %452 = arith.addf %449, %451 : vector<16x128xf32>
    %453 = vector.broadcast %125 : f32 to vector<16x128xf32>
    %454 = arith.mulf %441, %453 : vector<16x128xf32>
    %455 = arith.addf %452, %454 : vector<16x128xf32>
    %456 = vector.broadcast %130 : f32 to vector<16x128xf32>
    %457 = arith.addf %455, %456 : vector<16x128xf32>
    %458 = math.tanh %457 : vector<16x128xf32>
    %459 = vector.broadcast %106 : f32 to vector<16x128xf32>
    %460 = arith.mulf %373, %459 : vector<16x128xf32>
    %461 = vector.broadcast %111 : f32 to vector<16x128xf32>
    %462 = arith.mulf %390, %461 : vector<16x128xf32>
    %463 = arith.addf %460, %462 : vector<16x128xf32>
    %464 = vector.broadcast %116 : f32 to vector<16x128xf32>
    %465 = arith.mulf %407, %464 : vector<16x128xf32>
    %466 = arith.addf %463, %465 : vector<16x128xf32>
    %467 = vector.broadcast %121 : f32 to vector<16x128xf32>
    %468 = arith.mulf %424, %467 : vector<16x128xf32>
    %469 = arith.addf %466, %468 : vector<16x128xf32>
    %470 = vector.broadcast %126 : f32 to vector<16x128xf32>
    %471 = arith.mulf %441, %470 : vector<16x128xf32>
    %472 = arith.addf %469, %471 : vector<16x128xf32>
    %473 = vector.broadcast %131 : f32 to vector<16x128xf32>
    %474 = arith.addf %472, %473 : vector<16x128xf32>
    %475 = math.tanh %474 : vector<16x128xf32>
    %476 = vector.broadcast %107 : f32 to vector<16x128xf32>
    %477 = arith.mulf %373, %476 : vector<16x128xf32>
    %478 = vector.broadcast %112 : f32 to vector<16x128xf32>
    %479 = arith.mulf %390, %478 : vector<16x128xf32>
    %480 = arith.addf %477, %479 : vector<16x128xf32>
    %481 = vector.broadcast %117 : f32 to vector<16x128xf32>
    %482 = arith.mulf %407, %481 : vector<16x128xf32>
    %483 = arith.addf %480, %482 : vector<16x128xf32>
    %484 = vector.broadcast %122 : f32 to vector<16x128xf32>
    %485 = arith.mulf %424, %484 : vector<16x128xf32>
    %486 = arith.addf %483, %485 : vector<16x128xf32>
    %487 = vector.broadcast %127 : f32 to vector<16x128xf32>
    %488 = arith.mulf %441, %487 : vector<16x128xf32>
    %489 = arith.addf %486, %488 : vector<16x128xf32>
    %490 = vector.broadcast %132 : f32 to vector<16x128xf32>
    %491 = arith.addf %489, %490 : vector<16x128xf32>
    %492 = math.tanh %491 : vector<16x128xf32>
    %493 = vector.broadcast %108 : f32 to vector<16x128xf32>
    %494 = arith.mulf %373, %493 : vector<16x128xf32>
    %495 = vector.broadcast %113 : f32 to vector<16x128xf32>
    %496 = arith.mulf %390, %495 : vector<16x128xf32>
    %497 = arith.addf %494, %496 : vector<16x128xf32>
    %498 = vector.broadcast %118 : f32 to vector<16x128xf32>
    %499 = arith.mulf %407, %498 : vector<16x128xf32>
    %500 = arith.addf %497, %499 : vector<16x128xf32>
    %501 = vector.broadcast %123 : f32 to vector<16x128xf32>
    %502 = arith.mulf %424, %501 : vector<16x128xf32>
    %503 = arith.addf %500, %502 : vector<16x128xf32>
    %504 = vector.broadcast %128 : f32 to vector<16x128xf32>
    %505 = arith.mulf %441, %504 : vector<16x128xf32>
    %506 = arith.addf %503, %505 : vector<16x128xf32>
    %507 = vector.broadcast %133 : f32 to vector<16x128xf32>
    %508 = arith.addf %506, %507 : vector<16x128xf32>
    %509 = math.tanh %508 : vector<16x128xf32>
    %510 = vector.broadcast %109 : f32 to vector<16x128xf32>
    %511 = arith.mulf %373, %510 : vector<16x128xf32>
    %512 = vector.broadcast %114 : f32 to vector<16x128xf32>
    %513 = arith.mulf %390, %512 : vector<16x128xf32>
    %514 = arith.addf %511, %513 : vector<16x128xf32>
    %515 = vector.broadcast %119 : f32 to vector<16x128xf32>
    %516 = arith.mulf %407, %515 : vector<16x128xf32>
    %517 = arith.addf %514, %516 : vector<16x128xf32>
    %518 = vector.broadcast %124 : f32 to vector<16x128xf32>
    %519 = arith.mulf %424, %518 : vector<16x128xf32>
    %520 = arith.addf %517, %519 : vector<16x128xf32>
    %521 = vector.broadcast %129 : f32 to vector<16x128xf32>
    %522 = arith.mulf %441, %521 : vector<16x128xf32>
    %523 = arith.addf %520, %522 : vector<16x128xf32>
    %524 = vector.broadcast %134 : f32 to vector<16x128xf32>
    %525 = arith.addf %523, %524 : vector<16x128xf32>
    %526 = math.tanh %525 : vector<16x128xf32>
    %527 = vector.broadcast %135 : f32 to vector<16x128xf32>
    %528 = arith.mulf %458, %527 : vector<16x128xf32>
    %529 = vector.broadcast %136 : f32 to vector<16x128xf32>
    %530 = arith.mulf %475, %529 : vector<16x128xf32>
    %531 = arith.addf %528, %530 : vector<16x128xf32>
    %532 = vector.broadcast %137 : f32 to vector<16x128xf32>
    %533 = arith.mulf %492, %532 : vector<16x128xf32>
    %534 = arith.addf %531, %533 : vector<16x128xf32>
    %535 = vector.broadcast %138 : f32 to vector<16x128xf32>
    %536 = arith.mulf %509, %535 : vector<16x128xf32>
    %537 = arith.addf %534, %536 : vector<16x128xf32>
    %538 = vector.broadcast %139 : f32 to vector<16x128xf32>
    %539 = arith.mulf %526, %538 : vector<16x128xf32>
    %540 = arith.addf %537, %539 : vector<16x128xf32>
    %541 = vector.broadcast %140 : f32 to vector<16x128xf32>
    %542 = arith.addf %540, %541 : vector<16x128xf32>
    %543 = arith.index_cast %142 : i32 to index
    %c0_2 = arith.constant 0 : index
    %544 = vector.load %arg4[%543, %c0_2] : memref<16x128xf32, #tpu.memory_space<vmem>>, vector<16x128xf32>
    tpu.vector_store %arg4[%543, %c0_2], %542 {strides = array<i32>} : memref<16x128xf32, #tpu.memory_space<vmem>>, vector<16x128xf32>,
    %c1_i32 = arith.constant 1 : i32
    return
  }
  func.func @transform_0(%arg0: i32) -> i32 {
    %c0_i32 = arith.constant 0 : i32
    %c0_i32_0 = arith.constant 0 : i32
    return %c0_i32 : i32
  }
  func.func @transform_1(%arg0: i32) -> (i32, i32) {
    %c0_i32 = arith.constant 0 : i32
    %c0_i32_0 = arith.constant 0 : i32
    return %arg0, %c0_i32 : i32, i32
  }
  func.func @transform_2(%arg0: i32) -> (i32, i32) {
    %c0_i32 = arith.constant 0 : i32
    %c0_i32_0 = arith.constant 0 : i32
    return %arg0, %c0_i32 : i32, i32
  }
  func.func @transform_3(%arg0: i32) -> (i32, i32) {
    %c0_i32 = arith.constant 0 : i32
    %c0_i32_0 = arith.constant 0 : i32
    return %arg0, %c0_i32 : i32, i32
  }
}

</mosaic_0001>

<llo_original>
// kernel: tpu_custom_call.1
$region0: #{tpu_custom_call.1}
  #allocation0 [shape = 'u32[]', space=smem, size = 0x4, offset = 0x4, fixed_abs, tag = 'smem constant byte address 0x4 - core index']
  #allocation1 [shape = 'u32[72,128]{1,0:T(1,128)}', space=vmem, size = 0x9000, scoped, tag = 'internal scratch']
  %s0 = inlined_call_operand.hbm [shape: f32[141], index: 0, kind: input, shape index: {}]
  %s1 = inlined_call_operand.hbm [shape: f32[16,128], index: 1, kind: input, shape index: {}]
  %s2 = inlined_call_operand.hbm [shape: f32[16,128], index: 2, kind: input, shape index: {}]
  %s3 = inlined_call_operand.hbm [shape: f32[16,128], index: 3, kind: output, shape index: {}]
  %s4 = sld [smem:[#allocation0]]
  $region34: #{tpu_custom_call.1} parent=0
    _
  %s6 = ssub.s32 1, %s4
  %s7 = scalar_select 0, %s6, %s4
  $region1: #{tpu_custom_call.1} parent=0
    #allocation2 [shape = 'u8[1024]{0}', space=smem, size = 0x400, scoped, tag = 'input window, operand 0, single buffered']
    #allocation3 [shape = 's32[1]{0}', space=sflag, size = 0x4, scoped, tag = 'scoped memory for tpu_custom_call.1']
    #allocation4 [shape = 's32[1]{0}', space=sflag, size = 0x4, scoped, tag = 'scoped memory for tpu_custom_call.1']
    #allocation5 [shape = 's32[1]{0}', space=sflag, size = 0x4, scoped, tag = 'scoped memory for tpu_custom_call.1']
    #allocation6 [shape = 'u8[8192]{0}', space=vmem, size = 0x2000, scoped, tag = 'input window, operand 1, single buffered']
    #allocation7 [shape = 'u8[8192]{0}', space=vmem, size = 0x2000, scoped, tag = 'input window, operand 2, single buffered']
    #allocation8 [shape = 's32[1]{0}', space=sflag, size = 0x4, scoped, tag = 'scoped memory for tpu_custom_call.1']
    #allocation9 [shape = 'u8[8192]{0}', space=vmem, size = 0x2000, scoped, tag = 'output window, operand 0, single buffered']
    %8 = vsyncpa [#allocation5], 0
    %9 = vsyncpa [#allocation3], 0
    %10 = vsyncpa [#allocation8], 0
    %11 = vsyncpa [#allocation4], 0
    // Predicated region
    $region2: #{tpu_custom_call.1} parent=1 // pred_check
      _
    $region3: #{tpu_custom_call.1} parent=1 // pred_check_branch
      %13 = sbr.rel (0) target = $region5
    $region4: #{tpu_custom_call.1} parent=1 // pred_region
      %15 = vsyncadd [#allocation5], 0
      %s17 = sshll.u32 %s0, 4
      %s18 = int_to_ptr.hbm [resolvable:$true] %s17
      %20 = dma.hbm_to_smem %s18, 32, [#allocation2], [#allocation5]
    $region5: #{tpu_custom_call.1} parent=1 // pred_fallthru
      _
    // Predicated region
    $region6: #{tpu_custom_call.1} parent=1 // pred_check
      _
    $region7: #{tpu_custom_call.1} parent=1 // pred_check_branch
      %22 = sbr.rel (0) target = $region9
    $region8: #{tpu_custom_call.1} parent=1 // pred_region
      %24 = vsyncadd [#allocation3], 0
      %s25 = sshll.u32 %s1, 4
      %s26 = int_to_ptr.hbm [resolvable:$true] %s25
      %s27 = sshll.u32 [#allocation6], 4
      %s28 = int_to_ptr.vmem [resolvable:$true] %s27
      %33 = dma.hbm_to_vmem [thread:$0]  %s26, 256, %s28, [#allocation3], 128, 128, 8
    $region9: #{tpu_custom_call.1} parent=1 // pred_fallthru
      _
    // Predicated region
    $region10: #{tpu_custom_call.1} parent=1 // pred_check
      _
    $region11: #{tpu_custom_call.1} parent=1 // pred_check_branch
      %35 = sbr.rel (0) target = $region13
    $region12: #{tpu_custom_call.1} parent=1 // pred_region
      %37 = vsyncadd [#allocation8], 0
      %s38 = sshll.u32 %s2, 4
      %s39 = int_to_ptr.hbm [resolvable:$true] %s38
      %s40 = sshll.u32 [#allocation7], 4
      %s41 = int_to_ptr.vmem [resolvable:$true] %s40
      %46 = dma.hbm_to_vmem [thread:$0]  %s39, 256, %s41, [#allocation8], 128, 128, 8
    $region13: #{tpu_custom_call.1} parent=1 // pred_fallthru
      _
    // Predicated region
    $region14: #{tpu_custom_call.1} parent=1 // pred_check
      _
    $region15: #{tpu_custom_call.1} parent=1 // pred_check_branch
      %48 = sbr.rel (0) target = $region17
    $region16: #{tpu_custom_call.1} parent=1 // pred_region
      %50 = dma.done [#allocation5], 32
    $region17: #{tpu_custom_call.1} parent=1 // pred_fallthru
      _
    // Predicated region
    $region18: #{tpu_custom_call.1} parent=1 // pred_check
      _
    $region19: #{tpu_custom_call.1} parent=1 // pred_check_branch
      %52 = sbr.rel (0) target = $region21
    $region20: #{tpu_custom_call.1} parent=1 // pred_region
      %54 = dma.done [#allocation3], 256
    $region21: #{tpu_custom_call.1} parent=1 // pred_fallthru
      _
    // Predicated region
    $region22: #{tpu_custom_call.1} parent=1 // pred_check
      _
    $region23: #{tpu_custom_call.1} parent=1 // pred_check_branch
      %56 = sbr.rel (0) target = $region25
    $region24: #{tpu_custom_call.1} parent=1 // pred_region
      %58 = dma.done [#allocation8], 256
    $region25: #{tpu_custom_call.1} parent=1 // pred_fallthru
      _
    %59 = sfence
    %s60 = sld [smem:[#allocation2]]
    %s61 = sld [smem:[#allocation2 + $0x1]]
    %s62 = sld [smem:[#allocation2 + $0x2]]
    %s63 = sld [smem:[#allocation2 + $0x3]]
    %s64 = sld [smem:[#allocation2 + $0x4]]
    %s65 = sld [smem:[#allocation2 + $0x5]]
    %s66 = sld [smem:[#allocation2 + $0x6]]
    %s67 = sld [smem:[#allocation2 + $0x7]]
    %s68 = sld [smem:[#allocation2 + $0x8]]
    %s69 = sld [smem:[#allocation2 + $0x9]]
    %s70 = sld [smem:[#allocation2 + $0xa]]
    %s71 = sld [smem:[#allocation2 + $0xb]]
    %s72 = sld [smem:[#allocation2 + $0xc]]
    %s73 = sld [smem:[#allocation2 + $0xd]]
    %s74 = sld [smem:[#allocation2 + $0xe]]
    %s75 = sld [smem:[#allocation2 + $0xf]]
    %s76 = sld [smem:[#allocation2 + $0x10]]
    %s77 = sld [smem:[#allocation2 + $0x11]]
    %s78 = sld [smem:[#allocation2 + $0x12]]
    %s79 = sld [smem:[#allocation2 + $0x13]]
    %s80 = sld [smem:[#allocation2 + $0x14]]
    %s81 = sld [smem:[#allocation2 + $0x15]]
    %s82 = sld [smem:[#allocation2 + $0x16]]
    %s83 = sld [smem:[#allocation2 + $0x17]]
    %s84 = sld [smem:[#allocation2 + $0x18]]
    %s85 = sld [smem:[#allocation2 + $0x19]]
    %s86 = sld [smem:[#allocation2 + $0x1a]]
    %s87 = sld [smem:[#allocation2 + $0x1b]]
    %s88 = sld [smem:[#allocation2 + $0x1c]]
    %s89 = sld [smem:[#allocation2 + $0x1d]]
    %s90 = sld [smem:[#allocation2 + $0x1e]]
    %s91 = sld [smem:[#allocation2 + $0x1f]]
    %s92 = sld [smem:[#allocation2 + $0x20]]
    %s93 = sld [smem:[#allocation2 + $0x21]]
    %s94 = sld [smem:[#allocation2 + $0x22]]
    %s95 = sld [smem:[#allocation2 + $0x23]]
    %s96 = sld [smem:[#allocation2 + $0x24]]
    %s97 = sld [smem:[#allocation2 + $0x25]]
    %s98 = sld [smem:[#allocation2 + $0x26]]
    %s99 = sld [smem:[#allocation2 + $0x27]]
    %s100 = sld [smem:[#allocation2 + $0x28]]
    %s101 = sld [smem:[#allocation2 + $0x29]]
    %s102 = sld [smem:[#allocation2 + $0x2a]]
    %s103 = sld [smem:[#allocation2 + $0x2b]]
    %s104 = sld [smem:[#allocation2 + $0x2c]]
    %s105 = sld [smem:[#allocation2 + $0x2d]]
    %s106 = sld [smem:[#allocation2 + $0x2e]]
    %s107 = sld [smem:[#allocation2 + $0x2f]]
    %s108 = sld [smem:[#allocation2 + $0x30]]
    %s109 = sld [smem:[#allocation2 + $0x31]]
    %s110 = sld [smem:[#allocation2 + $0x32]]
    %s111 = sld [smem:[#allocation2 + $0x33]]
    %s112 = sld [smem:[#allocation2 + $0x34]]
    %s113 = sld [smem:[#allocation2 + $0x35]]
    %s114 = sld [smem:[#allocation2 + $0x36]]
    %s115 = sld [smem:[#allocation2 + $0x37]]
    %s116 = sld [smem:[#allocation2 + $0x38]]
    %s117 = sld [smem:[#allocation2 + $0x39]]
    %s118 = sld [smem:[#allocation2 + $0x3a]]
    %s119 = sld [smem:[#allocation2 + $0x3b]]
    %s120 = sld [smem:[#allocation2 + $0x3c]]
    %s121 = sld [smem:[#allocation2 + $0x3d]]
    %s122 = sld [smem:[#allocation2 + $0x3e]]
    %s123 = sld [smem:[#allocation2 + $0x3f]]
    %s124 = sld [smem:[#allocation2 + $0x40]]
    %s125 = sld [smem:[#allocation2 + $0x41]]
    %s126 = sld [smem:[#allocation2 + $0x42]]
    %s127 = sld [smem:[#allocation2 + $0x43]]
    %s128 = sld [smem:[#allocation2 + $0x44]]
    %s129 = sld [smem:[#allocation2 + $0x45]]
    %s130 = sld [smem:[#allocation2 + $0x46]]
    %s131 = sld [smem:[#allocation2 + $0x47]]
    %s132 = sld [smem:[#allocation2 + $0x48]]
    %s133 = sld [smem:[#allocation2 + $0x49]]
    %s134 = sld [smem:[#allocation2 + $0x4a]]
    %s135 = sld [smem:[#allocation2 + $0x4b]]
    %s136 = sld [smem:[#allocation2 + $0x4c]]
    %s137 = sld [smem:[#allocation2 + $0x4d]]
    %s138 = sld [smem:[#allocation2 + $0x4e]]
    %s139 = sld [smem:[#allocation2 + $0x4f]]
    %s140 = sld [smem:[#allocation2 + $0x50]]
    %s141 = sld [smem:[#allocation2 + $0x51]]
    %s142 = sld [smem:[#allocation2 + $0x52]]
    %s143 = sld [smem:[#allocation2 + $0x53]]
    %s144 = sld [smem:[#allocation2 + $0x54]]
    %s145 = sld [smem:[#allocation2 + $0x55]]
    %s146 = sld [smem:[#allocation2 + $0x56]]
    %s147 = sld [smem:[#allocation2 + $0x57]]
    %s148 = sld [smem:[#allocation2 + $0x58]]
    %s149 = sld [smem:[#allocation2 + $0x59]]
    %s150 = sld [smem:[#allocation2 + $0x5a]]
    %s151 = sld [smem:[#allocation2 + $0x5b]]
    %s152 = sld [smem:[#allocation2 + $0x5c]]
    %s153 = sld [smem:[#allocation2 + $0x5d]]
    %s154 = sld [smem:[#allocation2 + $0x5e]]
    %s155 = sld [smem:[#allocation2 + $0x5f]]
    %s156 = sld [smem:[#allocation2 + $0x60]]
    %s157 = sld [smem:[#allocation2 + $0x61]]
    %s158 = sld [smem:[#allocation2 + $0x62]]
    %s159 = sld [smem:[#allocation2 + $0x63]]
    %s160 = sld [smem:[#allocation2 + $0x64]]
    %s161 = sld [smem:[#allocation2 + $0x65]]
    %s162 = sld [smem:[#allocation2 + $0x66]]
    %s163 = sld [smem:[#allocation2 + $0x67]]
    %s164 = sld [smem:[#allocation2 + $0x68]]
    %s165 = sld [smem:[#allocation2 + $0x69]]
    %s166 = sld [smem:[#allocation2 + $0x6a]]
    %s167 = sld [smem:[#allocation2 + $0x6b]]
    %s168 = sld [smem:[#allocation2 + $0x6c]]
    %s169 = sld [smem:[#allocation2 + $0x6d]]
    %s170 = sld [smem:[#allocation2 + $0x6e]]
    %s171 = sld [smem:[#allocation2 + $0x6f]]
    %s172 = sld [smem:[#allocation2 + $0x70]]
    %s173 = sld [smem:[#allocation2 + $0x71]]
    %s174 = sld [smem:[#allocation2 + $0x72]]
    %s175 = sld [smem:[#allocation2 + $0x73]]
    %s176 = sld [smem:[#allocation2 + $0x74]]
    %s177 = sld [smem:[#allocation2 + $0x75]]
    %s178 = sld [smem:[#allocation2 + $0x76]]
    %s179 = sld [smem:[#allocation2 + $0x77]]
    %s180 = sld [smem:[#allocation2 + $0x78]]
    %s181 = sld [smem:[#allocation2 + $0x79]]
    %s182 = sld [smem:[#allocation2 + $0x7a]]
    %s183 = sld [smem:[#allocation2 + $0x7b]]
    %s184 = sld [smem:[#allocation2 + $0x7c]]
    %s185 = sld [smem:[#allocation2 + $0x7d]]
    %s186 = sld [smem:[#allocation2 + $0x7e]]
    %s187 = sld [smem:[#allocation2 + $0x7f]]
    %s188 = sld [smem:[#allocation2 + $0x80]]
    %s189 = sld [smem:[#allocation2 + $0x81]]
    %s190 = sld [smem:[#allocation2 + $0x82]]
    %s191 = sld [smem:[#allocation2 + $0x83]]
    %s192 = sld [smem:[#allocation2 + $0x84]]
    %s193 = sld [smem:[#allocation2 + $0x85]]
    %s194 = sld [smem:[#allocation2 + $0x86]]
    %s195 = sld [smem:[#allocation2 + $0x87]]
    %s196 = sld [smem:[#allocation2 + $0x88]]
    %s197 = sld [smem:[#allocation2 + $0x89]]
    %s198 = sld [smem:[#allocation2 + $0x8a]]
    %s199 = sld [smem:[#allocation2 + $0x8b]]
    %s200 = sld [smem:[#allocation2 + $0x8c]]
    %v201 = vld [vmem:[#allocation6] sm:$0xff]
    %v202 = vld [vmem:[#allocation6 + $0x8] sm:$0xff]
    %v203 = vld [vmem:[#allocation7] sm:$0xff]
    %v204 = vld [vmem:[#allocation7 + $0x8] sm:$0xff]
    %v205 = vstv %s60
    %v206 = vmul.f32 %v201, %v205
    %v207 = vmul.f32 %v202, %v205
    %v208 = vstv %s65
    %v209 = vmul.f32 %v203, %v208
    %v210 = vmul.f32 %v204, %v208
    %v211 = vadd.f32 %v206, %v209
    %v212 = vadd.f32 %v207, %v210
    %v213 = vstv %s70
    %v214 = vadd.f32 %v211, %v213
    %v215 = vadd.f32 %v212, %v213
    %v216 = vtanh.pop %v214
    %v217 = vtanh.pop %v215
    %v218 = vstv %s61
    %v219 = vmul.f32 %v201, %v218
    %v220 = vmul.f32 %v202, %v218
    %v221 = vstv %s66
    %v222 = vmul.f32 %v203, %v221
    %v223 = vmul.f32 %v204, %v221
    %v224 = vadd.f32 %v219, %v222
    %v225 = vadd.f32 %v220, %v223
    %v226 = vstv %s71
    %v227 = vadd.f32 %v224, %v226
    %v228 = vadd.f32 %v225, %v226
    %v229 = vtanh.pop %v227
    %v230 = vtanh.pop %v228
    %v231 = vstv %s62
    %v232 = vmul.f32 %v201, %v231
    %v233 = vmul.f32 %v202, %v231
    %v234 = vstv %s67
    %v235 = vmul.f32 %v203, %v234
    %v236 = vmul.f32 %v204, %v234
    %v237 = vadd.f32 %v232, %v235
    %v238 = vadd.f32 %v233, %v236
    %v239 = vstv %s72
    %v240 = vadd.f32 %v237, %v239
    %v241 = vadd.f32 %v238, %v239
    %v242 = vtanh.pop %v240
    %v243 = vtanh.pop %v241
    %v244 = vstv %s63
    %v245 = vmul.f32 %v201, %v244
    %v246 = vmul.f32 %v202, %v244
    %v247 = vstv %s68
    %v248 = vmul.f32 %v203, %v247
    %v249 = vmul.f32 %v204, %v247
    %v250 = vadd.f32 %v245, %v248
    %v251 = vadd.f32 %v246, %v249
    %v252 = vstv %s73
    %v253 = vadd.f32 %v250, %v252
    %v254 = vadd.f32 %v251, %v252
    %v255 = vtanh.pop %v253
    %v256 = vtanh.pop %v254
    %v257 = vstv %s64
    %v258 = vmul.f32 %v201, %v257
    %v259 = vmul.f32 %v202, %v257
    %v260 = vstv %s69
    %v261 = vmul.f32 %v203, %v260
    %v262 = vmul.f32 %v204, %v260
    %v263 = vadd.f32 %v258, %v261
    %v264 = vadd.f32 %v259, %v262
    %v265 = vstv %s74
    %v266 = vadd.f32 %v263, %v265
    %v267 = vadd.f32 %v264, %v265
    %v268 = vtanh.pop %v266
    %v269 = vtanh.pop %v267
    %v270 = vstv %s75
    %v271 = vmul.f32 %v216, %v270
    %v272 = vmul.f32 %v217, %v270
    %v273 = vstv %s80
    %v274 = vmul.f32 %v229, %v273
    %v275 = vmul.f32 %v230, %v273
    %v276 = vadd.f32 %v271, %v274
    %v277 = vadd.f32 %v272, %v275
    %v278 = vstv %s85
    %v279 = vmul.f32 %v242, %v278
    %v280 = vmul.f32 %v243, %v278
    %v281 = vadd.f32 %v276, %v279
    %v282 = vadd.f32 %v277, %v280
    %v283 = vstv %s90
    %v284 = vmul.f32 %v255, %v283
    %v285 = vmul.f32 %v256, %v283
    %v286 = vadd.f32 %v281, %v284
    %v287 = vadd.f32 %v282, %v285
    %v288 = vstv %s95
    %v289 = vmul.f32 %v268, %v288
    %v290 = vmul.f32 %v269, %v288
    %v291 = vadd.f32 %v286, %v289
    %v292 = vadd.f32 %v287, %v290
    %v293 = vstv %s100
    %v294 = vadd.f32 %v291, %v293
    %v295 = vadd.f32 %v292, %v293
    %v296 = vtanh.pop %v294
    %v297 = vtanh.pop %v295
    %v298 = vstv %s76
    %v299 = vmul.f32 %v216, %v298
    %v300 = vmul.f32 %v217, %v298
    %v301 = vstv %s81
    %v302 = vmul.f32 %v229, %v301
    %v303 = vmul.f32 %v230, %v301
    %v304 = vadd.f32 %v299, %v302
    %v305 = vadd.f32 %v300, %v303
    %v306 = vstv %s86
    %v307 = vmul.f32 %v242, %v306
    %v308 = vmul.f32 %v243, %v306
    %v309 = vadd.f32 %v304, %v307
    %v310 = vadd.f32 %v305, %v308
    %v311 = vstv %s91
    %v312 = vmul.f32 %v255, %v311
    %v313 = vmul.f32 %v256, %v311
    %v314 = vadd.f32 %v309, %v312
    %v315 = vadd.f32 %v310, %v313
    %v316 = vstv %s96
    %v317 = vmul.f32 %v268, %v316
    %v318 = vmul.f32 %v269, %v316
    %v319 = vadd.f32 %v314, %v317
    %v320 = vadd.f32 %v315, %v318
    %v321 = vstv %s101
    %v322 = vadd.f32 %v319, %v321
    %v323 = vadd.f32 %v320, %v321
    %v324 = vtanh.pop %v322
    %v325 = vtanh.pop %v323
    %v326 = vstv %s77
    %v327 = vmul.f32 %v216, %v326
    %v328 = vmul.f32 %v217, %v326
    %v329 = vstv %s82
    %v330 = vmul.f32 %v229, %v329
    %v331 = vmul.f32 %v230, %v329
    %v332 = vadd.f32 %v327, %v330
    %v333 = vadd.f32 %v328, %v331
    %v334 = vstv %s87
    %v335 = vmul.f32 %v242, %v334
    %v336 = vmul.f32 %v243, %v334
    %v337 = vadd.f32 %v332, %v335
    %v338 = vadd.f32 %v333, %v336
    %v339 = vstv %s92
    %v340 = vmul.f32 %v255, %v339
    %v341 = vmul.f32 %v256, %v339
    %v342 = vadd.f32 %v337, %v340
    %v343 = vadd.f32 %v338, %v341
    %v344 = vstv %s97
    %v345 = vmul.f32 %v268, %v344
    %v346 = vmul.f32 %v269, %v344
    %v347 = vadd.f32 %v342, %v345
    %v348 = vadd.f32 %v343, %v346
    %v349 = vstv %s102
    %v350 = vadd.f32 %v347, %v349
    %v351 = vadd.f32 %v348, %v349
    %v352 = vtanh.pop %v350
    %v353 = vtanh.pop %v351
    %v354 = vstv %s78
    %v355 = vmul.f32 %v216, %v354
    %v356 = vmul.f32 %v217, %v354
    %v357 = vstv %s83
    %v358 = vmul.f32 %v229, %v357
    %v359 = vmul.f32 %v230, %v357
    %v360 = vadd.f32 %v355, %v358
    %v361 = vadd.f32 %v356, %v359
    %v362 = vstv %s88
    %v363 = vmul.f32 %v242, %v362
    %v364 = vmul.f32 %v243, %v362
    %v365 = vadd.f32 %v360, %v363
    %v366 = vadd.f32 %v361, %v364
    %v367 = vstv %s93
    %v368 = vmul.f32 %v255, %v367
    %v369 = vmul.f32 %v256, %v367
    %v370 = vadd.f32 %v365, %v368
    %v371 = vadd.f32 %v366, %v369
    %v372 = vstv %s98
    %v373 = vmul.f32 %v268, %v372
    %v374 = vmul.f32 %v269, %v372
    %v375 = vadd.f32 %v370, %v373
    %v376 = vadd.f32 %v371, %v374
    %v377 = vstv %s103
    %v378 = vadd.f32 %v375, %v377
    %v379 = vadd.f32 %v376, %v377
    %v380 = vtanh.pop %v378
    %v381 = vtanh.pop %v379
    %v382 = vstv %s79
    %v383 = vmul.f32 %v216, %v382
    %v384 = vmul.f32 %v217, %v382
    %v385 = vstv %s84
    %v386 = vmul.f32 %v229, %v385
    %v387 = vmul.f32 %v230, %v385
    %v388 = vadd.f32 %v383, %v386
    %v389 = vadd.f32 %v384, %v387
    %v390 = vstv %s89
    %v391 = vmul.f32 %v242, %v390
    %v392 = vmul.f32 %v243, %v390
    %v393 = vadd.f32 %v388, %v391
    %v394 = vadd.f32 %v389, %v392
    %v395 = vstv %s94
    %v396 = vmul.f32 %v255, %v395
    %v397 = vmul.f32 %v256, %v395
    %v398 = vadd.f32 %v393, %v396
    %v399 = vadd.f32 %v394, %v397
    %v400 = vstv %s99
    %v401 = vmul.f32 %v268, %v400
    %v402 = vmul.f32 %v269, %v400
    %v403 = vadd.f32 %v398, %v401
    %v404 = vadd.f32 %v399, %v402
    %v405 = vstv %s104
    %v406 = vadd.f32 %v403, %v405
    %v407 = vadd.f32 %v404, %v405
    %v408 = vtanh.pop %v406
    %v409 = vtanh.pop %v407
    %v410 = vstv %s105
    %v411 = vmul.f32 %v296, %v410
    %v412 = vmul.f32 %v297, %v410
    %v413 = vstv %s110
    %v414 = vmul.f32 %v324, %v413
    %v415 = vmul.f32 %v325, %v413
    %v416 = vadd.f32 %v411, %v414
    %v417 = vadd.f32 %v412, %v415
    %v418 = vstv %s115
    %v419 = vmul.f32 %v352, %v418
    %v420 = vmul.f32 %v353, %v418
    %v421 = vadd.f32 %v416, %v419
    %v422 = vadd.f32 %v417, %v420
    %v423 = vstv %s120
    %v424 = vmul.f32 %v380, %v423
    %v425 = vmul.f32 %v381, %v423
    %v426 = vadd.f32 %v421, %v424
    %v427 = vadd.f32 %v422, %v425
    %v428 = vstv %s125
    %v429 = vmul.f32 %v408, %v428
    %v430 = vmul.f32 %v409, %v428
    %v431 = vadd.f32 %v426, %v429
    %v432 = vadd.f32 %v427, %v430
    %v433 = vstv %s130
    %v434 = vadd.f32 %v431, %v433
    %v435 = vadd.f32 %v432, %v433
    %v436 = vtanh.pop %v434
    %v437 = vtanh.pop %v435
    %v438 = vstv %s106
    %v439 = vmul.f32 %v296, %v438
    %v440 = vmul.f32 %v297, %v438
    %v441 = vstv %s111
    %v442 = vmul.f32 %v324, %v441
    %v443 = vmul.f32 %v325, %v441
    %v444 = vadd.f32 %v439, %v442
    %v445 = vadd.f32 %v440, %v443
    %v446 = vstv %s116
    %v447 = vmul.f32 %v352, %v446
    %v448 = vmul.f32 %v353, %v446
    %v449 = vadd.f32 %v444, %v447
    %v450 = vadd.f32 %v445, %v448
    %v451 = vstv %s121
    %v452 = vmul.f32 %v380, %v451
    %v453 = vmul.f32 %v381, %v451
    %v454 = vadd.f32 %v449, %v452
    %v455 = vadd.f32 %v450, %v453
    %v456 = vstv %s126
    %v457 = vmul.f32 %v408, %v456
    %v458 = vmul.f32 %v409, %v456
    %v459 = vadd.f32 %v454, %v457
    %v460 = vadd.f32 %v455, %v458
    %v461 = vstv %s131
    %v462 = vadd.f32 %v459, %v461
    %v463 = vadd.f32 %v460, %v461
    %v464 = vtanh.pop %v462
    %v465 = vtanh.pop %v463
    %v466 = vstv %s107
    %v467 = vmul.f32 %v296, %v466
    %v468 = vmul.f32 %v297, %v466
    %v469 = vstv %s112
    %v470 = vmul.f32 %v324, %v469
    %v471 = vmul.f32 %v325, %v469
    %v472 = vadd.f32 %v467, %v470
    %v473 = vadd.f32 %v468, %v471
    %v474 = vstv %s117
    %v475 = vmul.f32 %v352, %v474
    %v476 = vmul.f32 %v353, %v474
    %v477 = vadd.f32 %v472, %v475
    %v478 = vadd.f32 %v473, %v476
    %v479 = vstv %s122
    %v480 = vmul.f32 %v380, %v479
    %v481 = vmul.f32 %v381, %v479
    %v482 = vadd.f32 %v477, %v480
    %v483 = vadd.f32 %v478, %v481
    %v484 = vstv %s127
    %v485 = vmul.f32 %v408, %v484
    %v486 = vmul.f32 %v409, %v484
    %v487 = vadd.f32 %v482, %v485
    %v488 = vadd.f32 %v483, %v486
    %v489 = vstv %s132
    %v490 = vadd.f32 %v487, %v489
    %v491 = vadd.f32 %v488, %v489
    %v492 = vtanh.pop %v490
    %v493 = vtanh.pop %v491
    %v494 = vstv %s108
    %v495 = vmul.f32 %v296, %v494
    %v496 = vmul.f32 %v297, %v494
    %v497 = vstv %s113
    %v498 = vmul.f32 %v324, %v497
    %v499 = vmul.f32 %v325, %v497
    %v500 = vadd.f32 %v495, %v498
    %v501 = vadd.f32 %v496, %v499
    %v502 = vstv %s118
    %v503 = vmul.f32 %v352, %v502
    %v504 = vmul.f32 %v353, %v502
    %v505 = vadd.f32 %v500, %v503
    %v506 = vadd.f32 %v501, %v504
    %v507 = vstv %s123
    %v508 = vmul.f32 %v380, %v507
    %v509 = vmul.f32 %v381, %v507
    %v510 = vadd.f32 %v505, %v508
    %v511 = vadd.f32 %v506, %v509
    %v512 = vstv %s128
    %v513 = vmul.f32 %v408, %v512
    %v514 = vmul.f32 %v409, %v512
    %v515 = vadd.f32 %v510, %v513
    %v516 = vadd.f32 %v511, %v514
    %v517 = vstv %s133
    %v518 = vadd.f32 %v515, %v517
    %v519 = vadd.f32 %v516, %v517
    %v520 = vtanh.pop %v518
    %v521 = vtanh.pop %v519
    %v522 = vstv %s109
    %v523 = vmul.f32 %v296, %v522
    %v524 = vmul.f32 %v297, %v522
    %v525 = vstv %s114
    %v526 = vmul.f32 %v324, %v525
    %v527 = vmul.f32 %v325, %v525
    %v528 = vadd.f32 %v523, %v526
    %v529 = vadd.f32 %v524, %v527
    %v530 = vstv %s119
    %v531 = vmul.f32 %v352, %v530
    %v532 = vmul.f32 %v353, %v530
    %v533 = vadd.f32 %v528, %v531
    %v534 = vadd.f32 %v529, %v532
    %v535 = vstv %s124
    %v536 = vmul.f32 %v380, %v535
    %v537 = vmul.f32 %v381, %v535
    %v538 = vadd.f32 %v533, %v536
    %v539 = vadd.f32 %v534, %v537
    %v540 = vstv %s129
    %v541 = vmul.f32 %v408, %v540
    %v542 = vmul.f32 %v409, %v540
    %v543 = vadd.f32 %v538, %v541
    %v544 = vadd.f32 %v539, %v542
    %v545 = vstv %s134
    %v546 = vadd.f32 %v543, %v545
    %v547 = vadd.f32 %v544, %v545
    %v548 = vtanh.pop %v546
    %v549 = vtanh.pop %v547
    %v550 = vstv %s135
    %v551 = vmul.f32 %v436, %v550
    %v552 = vmul.f32 %v437, %v550
    %v553 = vstv %s140
    %v554 = vmul.f32 %v464, %v553
    %v555 = vmul.f32 %v465, %v553
    %v556 = vadd.f32 %v551, %v554
    %v557 = vadd.f32 %v552, %v555
    %v558 = vstv %s145
    %v559 = vmul.f32 %v492, %v558
    %v560 = vmul.f32 %v493, %v558
    %v561 = vadd.f32 %v556, %v559
    %v562 = vadd.f32 %v557, %v560
    %v563 = vstv %s150
    %v564 = vmul.f32 %v520, %v563
    %v565 = vmul.f32 %v521, %v563
    %v566 = vadd.f32 %v561, %v564
    %v567 = vadd.f32 %v562, %v565
    %v568 = vstv %s155
    %v569 = vmul.f32 %v548, %v568
    %v570 = vmul.f32 %v549, %v568
    %v571 = vadd.f32 %v566, %v569
    %v572 = vadd.f32 %v567, %v570
    %v573 = vstv %s160
    %v574 = vadd.f32 %v571, %v573
    %v575 = vadd.f32 %v572, %v573
    %v576 = vtanh.pop %v574
    %v577 = vtanh.pop %v575
    %v578 = vstv %s136
    %v579 = vmul.f32 %v436, %v578
    %v580 = vmul.f32 %v437, %v578
    %v581 = vstv %s141
    %v582 = vmul.f32 %v464, %v581
    %v583 = vmul.f32 %v465, %v581
    %v584 = vadd.f32 %v579, %v582
    %v585 = vadd.f32 %v580, %v583
    %v586 = vstv %s146
    %v587 = vmul.f32 %v492, %v586
    %v588 = vmul.f32 %v493, %v586
    %v589 = vadd.f32 %v584, %v587
    %v590 = vadd.f32 %v585, %v588
    %v591 = vstv %s151
    %v592 = vmul.f32 %v520, %v591
    %v593 = vmul.f32 %v521, %v591
    %v594 = vadd.f32 %v589, %v592
    %v595 = vadd.f32 %v590, %v593
    %v596 = vstv %s156
    %v597 = vmul.f32 %v548, %v596
    %v598 = vmul.f32 %v549, %v596
    %v599 = vadd.f32 %v594, %v597
    %v600 = vadd.f32 %v595, %v598
    %v601 = vstv %s161
    %v602 = vadd.f32 %v599, %v601
    %v603 = vadd.f32 %v600, %v601
    %v604 = vtanh.pop %v602
    %v605 = vtanh.pop %v603
    %v606 = vstv %s137
    %v607 = vmul.f32 %v436, %v606
    %v608 = vmul.f32 %v437, %v606
    %v609 = vstv %s142
    %v610 = vmul.f32 %v464, %v609
    %v611 = vmul.f32 %v465, %v609
    %v612 = vadd.f32 %v607, %v610
    %v613 = vadd.f32 %v608, %v611
    %v614 = vstv %s147
    %v615 = vmul.f32 %v492, %v614
    %v616 = vmul.f32 %v493, %v614
    %v617 = vadd.f32 %v612, %v615
    %v618 = vadd.f32 %v613, %v616
    %v619 = vstv %s152
    %v620 = vmul.f32 %v520, %v619
    %v621 = vmul.f32 %v521, %v619
    %v622 = vadd.f32 %v617, %v620
    %v623 = vadd.f32 %v618, %v621
    %v624 = vstv %s157
    %v625 = vmul.f32 %v548, %v624
    %v626 = vmul.f32 %v549, %v624
    %v627 = vadd.f32 %v622, %v625
    %v628 = vadd.f32 %v623, %v626
    %v629 = vstv %s162
    %v630 = vadd.f32 %v627, %v629
    %v631 = vadd.f32 %v628, %v629
    %v632 = vtanh.pop %v630
    %v633 = vtanh.pop %v631
    %v634 = vstv %s138
    %v635 = vmul.f32 %v436, %v634
    %v636 = vmul.f32 %v437, %v634
    %v637 = vstv %s143
    %v638 = vmul.f32 %v464, %v637
    %v639 = vmul.f32 %v465, %v637
    %v640 = vadd.f32 %v635, %v638
    %v641 = vadd.f32 %v636, %v639
    %v642 = vstv %s148
    %v643 = vmul.f32 %v492, %v642
    %v644 = vmul.f32 %v493, %v642
    %v645 = vadd.f32 %v640, %v643
    %v646 = vadd.f32 %v641, %v644
    %v647 = vstv %s153
    %v648 = vmul.f32 %v520, %v647
    %v649 = vmul.f32 %v521, %v647
    %v650 = vadd.f32 %v645, %v648
    %v651 = vadd.f32 %v646, %v649
    %v652 = vstv %s158
    %v653 = vmul.f32 %v548, %v652
    %v654 = vmul.f32 %v549, %v652
    %v655 = vadd.f32 %v650, %v653
    %v656 = vadd.f32 %v651, %v654
    %v657 = vstv %s163
    %v658 = vadd.f32 %v655, %v657
    %v659 = vadd.f32 %v656, %v657
    %v660 = vtanh.pop %v658
    %v661 = vtanh.pop %v659
    %v662 = vstv %s139
    %v663 = vmul.f32 %v436, %v662
    %v664 = vmul.f32 %v437, %v662
    %v665 = vstv %s144
    %v666 = vmul.f32 %v464, %v665
    %v667 = vmul.f32 %v465, %v665
    %v668 = vadd.f32 %v663, %v666
    %v669 = vadd.f32 %v664, %v667
    %v670 = vstv %s149
    %v671 = vmul.f32 %v492, %v670
    %v672 = vmul.f32 %v493, %v670
    %v673 = vadd.f32 %v668, %v671
    %v674 = vadd.f32 %v669, %v672
    %v675 = vstv %s154
    %v676 = vmul.f32 %v520, %v675
    %v677 = vmul.f32 %v521, %v675
    %v678 = vadd.f32 %v673, %v676
    %v679 = vadd.f32 %v674, %v677
    %v680 = vstv %s159
    %v681 = vmul.f32 %v548, %v680
    %v682 = vmul.f32 %v549, %v680
    %v683 = vadd.f32 %v678, %v681
    %v684 = vadd.f32 %v679, %v682
    %v685 = vstv %s164
    %v686 = vadd.f32 %v683, %v685
    %v687 = vadd.f32 %v684, %v685
    %v688 = vtanh.pop %v686
    %v689 = vtanh.pop %v687
    %v690 = vstv %s165
    %v691 = vmul.f32 %v576, %v690
    %v692 = vmul.f32 %v577, %v690
    %v693 = vstv %s170
    %v694 = vmul.f32 %v604, %v693
    %v695 = vmul.f32 %v605, %v693
    %v696 = vadd.f32 %v691, %v694
    %v697 = vadd.f32 %v692, %v695
    %v698 = vstv %s175
    %v699 = vmul.f32 %v632, %v698
    %v700 = vmul.f32 %v633, %v698
    %v701 = vadd.f32 %v696, %v699
    %v702 = vadd.f32 %v697, %v700
    %v703 = vstv %s180
    %v704 = vmul.f32 %v660, %v703
    %v705 = vmul.f32 %v661, %v703
    %v706 = vadd.f32 %v701, %v704
    %v707 = vadd.f32 %v702, %v705
    %v708 = vstv %s185
    %v709 = vmul.f32 %v688, %v708
    %v710 = vmul.f32 %v689, %v708
    %v711 = vadd.f32 %v706, %v709
    %v712 = vadd.f32 %v707, %v710
    %v713 = vstv %s190
    %v714 = vadd.f32 %v711, %v713
    %v715 = vadd.f32 %v712, %v713
    %v716 = vtanh.pop %v714
    %v717 = vtanh.pop %v715
    %v718 = vstv %s166
    %v719 = vmul.f32 %v576, %v718
    %v720 = vmul.f32 %v577, %v718
    %v721 = vstv %s171
    %v722 = vmul.f32 %v604, %v721
    %v723 = vmul.f32 %v605, %v721
    %v724 = vadd.f32 %v719, %v722
    %v725 = vadd.f32 %v720, %v723
    %v726 = vstv %s176
    %v727 = vmul.f32 %v632, %v726
    %v728 = vmul.f32 %v633, %v726
    %v729 = vadd.f32 %v724, %v727
    %v730 = vadd.f32 %v725, %v728
    %v731 = vstv %s181
    %v732 = vmul.f32 %v660, %v731
    %v733 = vmul.f32 %v661, %v731
    %v734 = vadd.f32 %v729, %v732
    %v735 = vadd.f32 %v730, %v733
    %v736 = vstv %s186
    %v737 = vmul.f32 %v688, %v736
    %v738 = vmul.f32 %v689, %v736
    %v739 = vadd.f32 %v734, %v737
    %v740 = vadd.f32 %v735, %v738
    %v741 = vstv %s191
    %v742 = vadd.f32 %v739, %v741
    %v743 = vadd.f32 %v740, %v741
    %v744 = vtanh.pop %v742
    %v745 = vtanh.pop %v743
    %v746 = vstv %s167
    %v747 = vmul.f32 %v576, %v746
    %v748 = vmul.f32 %v577, %v746
    %v749 = vstv %s172
    %v750 = vmul.f32 %v604, %v749
    %v751 = vmul.f32 %v605, %v749
    %v752 = vadd.f32 %v747, %v750
    %v753 = vadd.f32 %v748, %v751
    %v754 = vstv %s177
    %v755 = vmul.f32 %v632, %v754
    %v756 = vmul.f32 %v633, %v754
    %v757 = vadd.f32 %v752, %v755
    %v758 = vadd.f32 %v753, %v756
    %v759 = vstv %s182
    %v760 = vmul.f32 %v660, %v759
    %v761 = vmul.f32 %v661, %v759
    %v762 = vadd.f32 %v757, %v760
    %v763 = vadd.f32 %v758, %v761
    %v764 = vstv %s187
    %v765 = vmul.f32 %v688, %v764
    %v766 = vmul.f32 %v689, %v764
    %v767 = vadd.f32 %v762, %v765
    %v768 = vadd.f32 %v763, %v766
    %v769 = vstv %s192
    %v770 = vadd.f32 %v767, %v769
    %v771 = vadd.f32 %v768, %v769
    %v772 = vtanh.pop %v770
    %v773 = vtanh.pop %v771
    %v774 = vstv %s168
    %v775 = vmul.f32 %v576, %v774
    %v776 = vmul.f32 %v577, %v774
    %v777 = vstv %s173
    %v778 = vmul.f32 %v604, %v777
    %v779 = vmul.f32 %v605, %v777
    %v780 = vadd.f32 %v775, %v778
    %v781 = vadd.f32 %v776, %v779
    %v782 = vstv %s178
    %v783 = vmul.f32 %v632, %v782
    %v784 = vmul.f32 %v633, %v782
    %v785 = vadd.f32 %v780, %v783
    %v786 = vadd.f32 %v781, %v784
    %v787 = vstv %s183
    %v788 = vmul.f32 %v660, %v787
    %v789 = vmul.f32 %v661, %v787
    %v790 = vadd.f32 %v785, %v788
    %v791 = vadd.f32 %v786, %v789
    %v792 = vstv %s188
    %v793 = vmul.f32 %v688, %v792
    %v794 = vmul.f32 %v689, %v792
    %v795 = vadd.f32 %v790, %v793
    %v796 = vadd.f32 %v791, %v794
    %v797 = vstv %s193
    %v798 = vadd.f32 %v795, %v797
    %v799 = vadd.f32 %v796, %v797
    %v800 = vtanh.pop %v798
    %v801 = vtanh.pop %v799
    %v802 = vstv %s169
    %v803 = vmul.f32 %v576, %v802
    %v804 = vmul.f32 %v577, %v802
    %v805 = vstv %s174
    %v806 = vmul.f32 %v604, %v805
    %v807 = vmul.f32 %v605, %v805
    %v808 = vadd.f32 %v803, %v806
    %v809 = vadd.f32 %v804, %v807
    %v810 = vstv %s179
    %v811 = vmul.f32 %v632, %v810
    %v812 = vmul.f32 %v633, %v810
    %v813 = vadd.f32 %v808, %v811
    %v814 = vadd.f32 %v809, %v812
    %v815 = vstv %s184
    %v816 = vmul.f32 %v660, %v815
    %v817 = vmul.f32 %v661, %v815
    %v818 = vadd.f32 %v813, %v816
    %v819 = vadd.f32 %v814, %v817
    %v820 = vstv %s189
    %v821 = vmul.f32 %v688, %v820
    %v822 = vmul.f32 %v689, %v820
    %v823 = vadd.f32 %v818, %v821
    %v824 = vadd.f32 %v819, %v822
    %v825 = vstv %s194
    %v826 = vadd.f32 %v823, %v825
    %v827 = vadd.f32 %v824, %v825
    %v828 = vtanh.pop %v826
    %v829 = vtanh.pop %v827
    %v830 = vstv %s195
    %v831 = vmul.f32 %v716, %v830
    %v832 = vmul.f32 %v717, %v830
    %v833 = vstv %s196
    %v834 = vmul.f32 %v744, %v833
    %v835 = vmul.f32 %v745, %v833
    %v836 = vadd.f32 %v831, %v834
    %v837 = vadd.f32 %v832, %v835
    %v838 = vstv %s197
    %v839 = vmul.f32 %v772, %v838
    %v840 = vmul.f32 %v773, %v838
    %v841 = vadd.f32 %v836, %v839
    %v842 = vadd.f32 %v837, %v840
    %v843 = vstv %s198
    %v844 = vmul.f32 %v800, %v843
    %v845 = vmul.f32 %v801, %v843
    %v846 = vadd.f32 %v841, %v844
    %v847 = vadd.f32 %v842, %v845
    %v848 = vstv %s199
    %v849 = vmul.f32 %v828, %v848
    %v850 = vmul.f32 %v829, %v848
    %v851 = vadd.f32 %v846, %v849
    %v852 = vadd.f32 %v847, %v850
    %v853 = vstv %s200
    %v854 = vadd.f32 %v851, %v853
    %v855 = vadd.f32 %v852, %v853
    %856 = vst [vmem:[#allocation9] sm:$0xff] %v854
    %857 = vst [vmem:[#allocation9 + $0x8] sm:$0xff] %v855
    // Predicated region
    $region26: #{tpu_custom_call.1} parent=1 // pred_check
      _
    $region27: #{tpu_custom_call.1} parent=1 // pred_check_branch
      %859 = sbr.rel (0) target = $region29
    $region28: #{tpu_custom_call.1} parent=1 // pred_region
      %861 = vsyncadd [#allocation4], 0
      %s862 = sshll.u32 [#allocation9], 4
      %s863 = int_to_ptr.vmem [resolvable:$true] %s862
      %s864 = sshll.u32 %s3, 4
      %s865 = int_to_ptr.hbm [resolvable:$true] %s864
      %870 = dma.vmem_to_hbm [thread:$0]  %s863, 256, %s865, [#allocation4], 128, 128, 8
    $region29: #{tpu_custom_call.1} parent=1 // pred_fallthru
      _
    // Predicated region
    $region30: #{tpu_custom_call.1} parent=1 // pred_check
      _
    $region31: #{tpu_custom_call.1} parent=1 // pred_check_branch
      %872 = sbr.rel (0) target = $region33
    $region32: #{tpu_custom_call.1} parent=1 // pred_region
      %874 = dma.done [#allocation4], 256
    $region33: #{tpu_custom_call.1} parent=1 // pred_fallthru
      _
    %875 = vsyncpa [#allocation3], 1
    %876 = vsyncpa [#allocation8], 1
    %877 = vsyncpa [#allocation4], 1
    %878 = vsyncpa [#allocation5], 1

</llo_original>
